<compile_context>
chip_gen: v6e
topology: v6e:2x2x1
jax: 0.10.0
libtpu: 0.0.40
codegen_flags: <defaults>
</compile_context>

<pallas_src>
import jax
import jax.numpy as jnp
from jax import lax
from jax.experimental import pallas as pl
from jax.experimental.pallas import tpu as pltpu

B_GRAPHS = 8            # graphs per batch
GRAPHS_PER_STEP = 4     # graphs per grid step (=> grid=(2,); one step per v7x core)
N_NODES = 32            # nodes per graph
F_IN = 16               # in_channels
OUT_CHANNELS = 32       # heads * per-head dim (== N_NODES; fused masks rely on this)
HEADS = 4
C_PER_HEAD = OUT_CHANNELS // HEADS
N_EDGES = 64
NEG_SLOPE = 0.2         # GATConv negative_slope and block's LeakyReLU(0.2)
LN_EPS = 1e-5

HN = HEADS * N_NODES                  # 128  (rows of the fused attention tile)
GN = GRAPHS_PER_STEP * N_NODES        # 128  (cols of the fused attention tile)
GC = GRAPHS_PER_STEP * OUT_CHANNELS   # 128  (output lanes per step)

assert OUT_CHANNELS == N_NODES        # one shared [128,128] graph-block mask serves all roles
assert B_GRAPHS % GRAPHS_PER_STEP == 0


def gat_block_kernel(x_t_ref, x_flat_ref, adj_ref, w_ref, w_t_ref,
                     att_ref, masks_ref, fold_ref, params_ref, out_ref):
    f32 = jnp.float32
    x_t = x_t_ref[...]          # [F_IN, G*N]
    x_fl = x_flat_ref[...]      # [G*N, F_IN]
    adj = adj_ref[...]          # [N, G*N]    adj[i, g*N+j] = 1 iff edge j -> i in graph g
    w = w_ref[...]              # [F_IN, H*C]
    w_t = w_t_ref[...]          # [H*C, F_IN]
    att_dst_sp = att_ref[0]     # [H*N, H*C]  row (h,i), col (h',c): att_dst[c,h] * (h'==h)
    att_src_sp = att_ref[1]     # [H*N, H*C]
    m_graph = masks_ref[0]      # [128,128]   (r//32 == c//32)   graph block mask
    m_diag = masks_ref[1]       # [128,128]   (r%32  == c%32)    node-diagonal mask
    m_head = masks_ref[2]       # [128,128]   (r//32 == (c%32)//8) head-match mask
    u_fold = fold_ref[0]        # [N, H*N]    (i == col % N)     head->node fold
    eye_t = fold_ref[1]         # [H*C, G*H*C] (k == col % H*C)  lane-tiled identity
    prm = params_ref[...]       # [3, G*H*C]  rows: tiled (gat bias, ln gamma, ln beta)
    bias_t, gamma_t, beta_t = prm[0:1, :], prm[1:2, :], prm[2:3, :]

    # Shared linear projection, batched over this step's 4 graphs, in both layouts.
    xp_t = jnp.dot(w_t, x_t, preferred_element_type=f32)     # [H*C, G*N]
    xp_fl = jnp.dot(x_fl, w, preferred_element_type=f32)     # [G*N, H*C]

    # Attention logits for all heads & graphs at once: rows (h,i)=target, cols (g,j)=source.
    e_src = jnp.dot(att_src_sp, xp_t, preferred_element_type=f32)   # [(h,i),(g,j)] = <xp[g,j,h], a_src_h>
    d_dst = jnp.dot(att_dst_sp, xp_t, preferred_element_type=f32)   # [(h,i),(g,i')] = <xp[g,i',h], a_dst_h>
    e_dst = jnp.dot(d_dst * m_diag, m_graph,
                    preferred_element_type=f32)              # select i'==i, broadcast over j
    e = e_dst + e_src
    e = jnp.where(e > 0, e, NEG_SLOPE * e)                   # LeakyReLU BEFORE the adjacency mask
    adj_rep = jnp.concatenate([adj] * HEADS, axis=0)         # [H*N, G*N] sublane copies (no MXU)
    e = jnp.where(adj_rep > 0, e, -1e30)

    # Masked softmax over incoming edges j (per 32-lane graph segment).  Subtracting
    # the full-row max (across the 4 graphs sharing a row) cancels exactly in num/den
    # below; it only deviates if cross-graph logits differ by >~88 (exp underflow),
    # impossible at these magnitudes.  Masked logits (-1e30) underflow to exactly 0;
    # self-loops guarantee each segment's denominator is > 0.
    m_row = jnp.max(e, axis=1, keepdims=True)
    p = jnp.exp(e - m_row)                                                # [H*N, G*N]
    denom = jnp.dot(p, m_graph, preferred_element_type=f32)              # segment sums, broadcast

    # Aggregation over sources (unnormalised; normalised after the fold so the
    # denominator chain runs in parallel with the value chain).
    xp_bd = jnp.dot(xp_fl, eye_t, preferred_element_type=f32) * m_graph  # block-diag xp: [(g,j),(g',h,c)]
    agg = jnp.dot(p, xp_bd, preferred_element_type=f32)                  # [(h,i),(g,h',c)]

    # Fold heads back onto nodes with graphs along lanes -> lane-dense [N, G*H*C].
    num = jnp.dot(u_fold, agg * m_head, preferred_element_type=f32)      # [N, G*H*C]
    den = jnp.dot(u_fold, denom * m_head, preferred_element_type=f32)    # matching softmax denominators
    y = num / den + bias_t                                               # GATConv output + bias

    # LayerNorm over each graph's H*C features (per 32-lane segment via m_graph matmul),
    # then LeakyReLU(0.2).
    mean = jnp.dot(y, m_graph, preferred_element_type=f32) * (1.0 / OUT_CHANNELS)
    d = y - mean
    var = jnp.dot(d * d, m_graph, preferred_element_type=f32) * (1.0 / OUT_CHANNELS)
    y = d * lax.rsqrt(var + LN_EPS)
    y = y * gamma_t + beta_t
    y = jnp.where(y > 0, y, NEG_SLOPE * y)

    # TODO(synk): nn.Dropout(0.2) and GATConv attention dropout omitted — inference
    # semantics (identity); stochastic masking is not part of a deterministic forward.
    out_ref[...] = y


@jax.jit
def gat_conv_block(x, adj, w, w_t, att_sp, masks, fold, params):
    b, n, f = x.shape
    assert n == N_NODES and f == F_IN and b % GRAPHS_PER_STEP == 0
    steps = b // GRAPHS_PER_STEP

    # Layout plumbing (host/XLA side): node-major and feature-major views of x,
    # and adjacency with the graph axis folded into lanes.
    x_flat = x.reshape(b * n, f)                                   # [B*N, F_IN]
    x_t = x_flat.T                                                 # [F_IN, B*N]
    adj_wide = jnp.transpose(adj, (1, 0, 2)).reshape(n, b * n)     # adj_wide[i, g*N+j] = adj[g,i,j]

    out_wide = pl.pallas_call(
        gat_block_kernel,
        out_shape=jax.ShapeDtypeStruct((N_NODES, b * OUT_CHANNELS), jnp.float32),
        grid_spec=pltpu.PrefetchScalarGridSpec(
            num_scalar_prefetch=0,
            grid=(steps,),
            in_specs=[
                pl.BlockSpec((F_IN, GN), lambda i: (0, i)),                # x_t
                pl.BlockSpec((GN, F_IN), lambda i: (i, 0)),                # x_flat
                pl.BlockSpec((N_NODES, GN), lambda i: (0, i)),             # adj_wide
                pl.BlockSpec((F_IN, OUT_CHANNELS), lambda i: (0, 0)),      # w
                pl.BlockSpec((OUT_CHANNELS, F_IN), lambda i: (0, 0)),      # w_t
                pl.BlockSpec((2, HN, OUT_CHANNELS), lambda i: (0, 0, 0)),  # att spreads
                pl.BlockSpec((3, HN, GN), lambda i: (0, 0, 0)),            # structure masks
                pl.BlockSpec((2, N_NODES, HN), lambda i: (0, 0, 0)),       # fold matrices
                pl.BlockSpec((3, GC), lambda i: (0, 0)),                   # bias/gamma/beta (tiled)
            ],
            out_specs=pl.BlockSpec((N_NODES, GC), lambda i: (0, i)),       # lane-dense [32, 128] block
        ),
        compiler_params=pltpu.CompilerParams(
            dimension_semantics=("parallel",)),
    )(x_t, x_flat, adj_wide, w, w_t, att_sp, masks, fold, params)

    # [N, B*H*C] -> [B, N, H*C]
    return jnp.transpose(out_wide.reshape(N_NODES, b, OUT_CHANNELS), (1, 0, 2))


def build_constants(w, att_src, att_dst, bias, gamma, beta):
    """Host-side packed constants for the fused kernel."""
    f32 = jnp.float32
    g = GRAPHS_PER_STEP

    # Per-head attention vectors spread onto head-block rows: row (h,i), col (h',c).
    row_head = jnp.repeat(jnp.arange(HEADS), N_NODES)                # [H*N]
    col_head = jnp.repeat(jnp.arange(HEADS), C_PER_HEAD)             # [H*C]
    head_block = (row_head[:, None] == col_head[None, :]).astype(f32)
    att_dst_sp = head_block * att_dst.T.reshape(1, OUT_CHANNELS)     # col h*C+c -> att_dst[c,h]
    att_src_sp = head_block * att_src.T.reshape(1, OUT_CHANNELS)
    att_sp = jnp.stack([att_dst_sp, att_src_sp], axis=0)             # [2, H*N, H*C]

    # 0/1 structure masks over the fused [128, 128] tiles (valid since N == H*C == 32).
    idx = jnp.arange(HN)
    m_graph = (idx[:, None] // N_NODES == idx[None, :] // N_NODES).astype(f32)
    m_diag = (idx[:, None] % N_NODES == idx[None, :] % N_NODES).astype(f32)
    m_head = (idx[:, None] // N_NODES ==
              (idx[None, :] % OUT_CHANNELS) // C_PER_HEAD).astype(f32)
    masks = jnp.stack([m_graph, m_diag, m_head], axis=0)             # [3, 128, 128]

    u_fold = jnp.tile(jnp.eye(N_NODES, dtype=f32), (1, HEADS))       # [N, H*N]
    eye_t = jnp.tile(jnp.eye(OUT_CHANNELS, dtype=f32), (1, g))       # [H*C, G*H*C]
    fold = jnp.stack([u_fold, eye_t], axis=0)                        # [2, 32, 128]

    params = jnp.concatenate([jnp.tile(bias, (1, g)),
                              jnp.tile(gamma, (1, g)),
                              jnp.tile(beta, (1, g))], axis=0)       # [3, G*H*C]
    return w.T, att_sp, masks, fold, params


def gat_conv_block_ref_single(x, adj, w, att_src, att_dst, bias, gamma, beta):
    """Pure-JAX per-graph reference of the same math (unfused, per-head)."""
    xp = x @ w
    outs = []
    for h in range(HEADS):
        xh = xp[:, h * C_PER_HEAD:(h + 1) * C_PER_HEAD]
        a_src = xh @ att_src[:, h:h + 1]
        a_dst = xh @ att_dst[:, h:h + 1]
        e = a_dst + a_src.T
        e = jnp.where(e > 0, e, NEG_SLOPE * e)
        e = jnp.where(adj > 0, e, -1e30)
        p = jnp.where(adj > 0, jnp.exp(e - e.max(axis=1, keepdims=True)), 0.0)
        alpha = p / p.sum(axis=1, keepdims=True)
        outs.append(alpha @ xh)
    out = jnp.concatenate(outs, axis=-1) + bias
    mean = out.mean(axis=-1, keepdims=True)
    var = ((out - mean) ** 2).mean(axis=-1, keepdims=True)
    out = (out - mean) / jnp.sqrt(var + LN_EPS) * gamma + beta
    return jnp.where(out > 0, out, NEG_SLOPE * out)


if __name__ == "__main__":
    key = jax.random.PRNGKey(0)
    k_x, k_src, k_dst, k_w, k_as, k_ad, k_b, k_g, k_be = jax.random.split(key, 9)

    # Batch of B graphs: node features and random edge lists (src -> dst).
    x = jax.random.normal(k_x, (B_GRAPHS, N_NODES, F_IN), dtype=jnp.float32)
    src = jax.random.randint(k_src, (B_GRAPHS, N_EDGES), 0, N_NODES)
    dst = jax.random.randint(k_dst, (B_GRAPHS, N_EDGES), 0, N_NODES)

    # Dense adjacency with self-loops: adj[b, target, source].
    adj = jnp.zeros((B_GRAPHS, N_NODES, N_NODES), jnp.float32)
    adj = adj.at[jnp.arange(B_GRAPHS)[:, None], dst, src].set(1.0)
    node_idx = jnp.arange(N_NODES)
    adj = adj.at[:, node_idx, node_idx].set(1.0)

    # Deterministic parameter init (shapes as in GATConv / LayerNorm __init__).
    w = 0.1 * jax.random.normal(k_w, (F_IN, OUT_CHANNELS), dtype=jnp.float32)
    att_src = 0.1 * jax.random.normal(k_as, (C_PER_HEAD, HEADS), dtype=jnp.float32)
    att_dst = 0.1 * jax.random.normal(k_ad, (C_PER_HEAD, HEADS), dtype=jnp.float32)
    bias = 0.1 * jax.random.normal(k_b, (1, OUT_CHANNELS), dtype=jnp.float32)
    gamma = 1.0 + 0.1 * jax.random.normal(k_g, (1, OUT_CHANNELS), dtype=jnp.float32)
    beta = 0.1 * jax.random.normal(k_be, (1, OUT_CHANNELS), dtype=jnp.float32)

    w_t, att_sp, masks, fold, params = build_constants(w, att_src, att_dst, bias, gamma, beta)

    out = gat_conv_block(x, adj, w, w_t, att_sp, masks, fold, params)
    out = jax.block_until_ready(out)

    ref = jax.vmap(
        lambda xb, ab: gat_conv_block_ref_single(
            xb, ab, w, att_src, att_dst, bias, gamma, beta))(x, adj)

    assert out.shape == (B_GRAPHS, N_NODES, OUT_CHANNELS)
    assert jnp.allclose(out, ref, atol=2e-3, rtol=2e-3), float(jnp.max(jnp.abs(out - ref)))

    print("KERNEL_OK")
</pallas_src>

<mosaic_0001>
module attributes {stable_mosaic.version = 11 : i64} {
  func.func @gat_block_kernel(%arg0: i32, %arg1: memref<16x128xf32, #tpu.memory_space<vmem>>, %arg2: memref<128x16xf32, #tpu.memory_space<vmem>>, %arg3: memref<32x128xf32, #tpu.memory_space<vmem>>, %arg4: memref<16x32xf32, #tpu.memory_space<vmem>>, %arg5: memref<32x16xf32, #tpu.memory_space<vmem>>, %arg6: memref<2x128x32xf32, #tpu.memory_space<vmem>>, %arg7: memref<3x128x128xf32, #tpu.memory_space<vmem>>, %arg8: memref<2x32x128xf32, #tpu.memory_space<vmem>>, %arg9: memref<3x128xf32, #tpu.memory_space<vmem>>, %arg10: memref<32x128xf32, #tpu.memory_space<vmem>>) attributes {dimension_semantics = [#tpu.dimension_semantics<parallel>], iteration_bounds = array<i64: 2>, scalar_prefetch = 0 : i64, scratch_operands = 0 : i64, tpu.core_type = #tpu.core_type<tc>, window_params = [{transform_indices = @transform_0, window_bounds = array<i64: 16, 128>}, {transform_indices = @transform_1, window_bounds = array<i64: 128, 16>}, {transform_indices = @transform_2, window_bounds = array<i64: 32, 128>}, {pipeline_mode = #tpu.pipeline_mode<synchronous>, transform_indices = @transform_3, window_bounds = array<i64: 16, 32>}, {pipeline_mode = #tpu.pipeline_mode<synchronous>, transform_indices = @transform_4, window_bounds = array<i64: 32, 16>}, {pipeline_mode = #tpu.pipeline_mode<synchronous>, transform_indices = @transform_5, window_bounds = array<i64: 2, 128, 32>}, {pipeline_mode = #tpu.pipeline_mode<synchronous>, transform_indices = @transform_6, window_bounds = array<i64: 3, 128, 128>}, {pipeline_mode = #tpu.pipeline_mode<synchronous>, transform_indices = @transform_7, window_bounds = array<i64: 2, 32, 128>}, {pipeline_mode = #tpu.pipeline_mode<synchronous>, transform_indices = @transform_8, window_bounds = array<i64: 3, 128>}, {transform_indices = @transform_9, window_bounds = array<i64: 32, 128>}]} {
    %c0 = arith.constant 0 : index
    %c0_0 = arith.constant 0 : index
    %0 = vector.load %arg1[%c0, %c0_0] : memref<16x128xf32, #tpu.memory_space<vmem>>, vector<16x128xf32>
    %c0_1 = arith.constant 0 : index
    %c0_2 = arith.constant 0 : index
    %1 = vector.load %arg2[%c0_1, %c0_2] : memref<128x16xf32, #tpu.memory_space<vmem>>, vector<128x16xf32>
    %c0_3 = arith.constant 0 : index
    %c0_4 = arith.constant 0 : index
    %2 = vector.load %arg3[%c0_3, %c0_4] : memref<32x128xf32, #tpu.memory_space<vmem>>, vector<32x128xf32>
    %c0_5 = arith.constant 0 : index
    %c0_6 = arith.constant 0 : index
    %3 = vector.load %arg4[%c0_5, %c0_6] : memref<16x32xf32, #tpu.memory_space<vmem>>, vector<16x32xf32>
    %c0_7 = arith.constant 0 : index
    %c0_8 = arith.constant 0 : index
    %4 = vector.load %arg5[%c0_7, %c0_8] : memref<32x16xf32, #tpu.memory_space<vmem>>, vector<32x16xf32>
    %c0_9 = arith.constant 0 : index
    %c0_10 = arith.constant 0 : index
    %c0_11 = arith.constant 0 : index
    %5 = vector.load %arg6[%c0_9, %c0_10, %c0_11] : memref<2x128x32xf32, #tpu.memory_space<vmem>>, vector<1x128x32xf32>
    %6 = vector.shape_cast %5 : vector<1x128x32xf32> to vector<128x32xf32>
    %c1 = arith.constant 1 : index
    %c0_12 = arith.constant 0 : index
    %c0_13 = arith.constant 0 : index
    %7 = vector.load %arg6[%c1, %c0_12, %c0_13] : memref<2x128x32xf32, #tpu.memory_space<vmem>>, vector<1x128x32xf32>
    %8 = vector.shape_cast %7 : vector<1x128x32xf32> to vector<128x32xf32>
    %c0_14 = arith.constant 0 : index
    %c0_15 = arith.constant 0 : index
    %c0_16 = arith.constant 0 : index
    %9 = vector.load %arg7[%c0_14, %c0_15, %c0_16] : memref<3x128x128xf32, #tpu.memory_space<vmem>>, vector<1x128x128xf32>
    %10 = vector.shape_cast %9 : vector<1x128x128xf32> to vector<128x128xf32>
    %c1_17 = arith.constant 1 : index
    %c0_18 = arith.constant 0 : index
    %c0_19 = arith.constant 0 : index
    %11 = vector.load %arg7[%c1_17, %c0_18, %c0_19] : memref<3x128x128xf32, #tpu.memory_space<vmem>>, vector<1x128x128xf32>
    %12 = vector.shape_cast %11 : vector<1x128x128xf32> to vector<128x128xf32>
    %c2 = arith.constant 2 : index
    %c0_20 = arith.constant 0 : index
    %c0_21 = arith.constant 0 : index
    %13 = vector.load %arg7[%c2, %c0_20, %c0_21] : memref<3x128x128xf32, #tpu.memory_space<vmem>>, vector<1x128x128xf32>
    %14 = vector.shape_cast %13 : vector<1x128x128xf32> to vector<128x128xf32>
    %c0_22 = arith.constant 0 : index
    %c0_23 = arith.constant 0 : index
    %c0_24 = arith.constant 0 : index
    %15 = vector.load %arg8[%c0_22, %c0_23, %c0_24] : memref<2x32x128xf32, #tpu.memory_space<vmem>>, vector<1x32x128xf32>
    %16 = vector.shape_cast %15 : vector<1x32x128xf32> to vector<32x128xf32>
    %c1_25 = arith.constant 1 : index
    %c0_26 = arith.constant 0 : index
    %c0_27 = arith.constant 0 : index
    %17 = vector.load %arg8[%c1_25, %c0_26, %c0_27] : memref<2x32x128xf32, #tpu.memory_space<vmem>>, vector<1x32x128xf32>
    %18 = vector.shape_cast %17 : vector<1x32x128xf32> to vector<32x128xf32>
    %c0_28 = arith.constant 0 : index
    %c0_29 = arith.constant 0 : index
    %19 = vector.load %arg9[%c0_28, %c0_29] : memref<3x128xf32, #tpu.memory_space<vmem>>, vector<3x128xf32>
    %20 = vector.extract_strided_slice %19 {offsets = [0, 0], sizes = [1, 128], strides = [1, 1]} : vector<3x128xf32> to vector<1x128xf32>
    %21 = vector.extract_strided_slice %19 {offsets = [1, 0], sizes = [1, 128], strides = [1, 1]} : vector<3x128xf32> to vector<1x128xf32>
    %22 = vector.extract_strided_slice %19 {offsets = [2, 0], sizes = [1, 128], strides = [1, 1]} : vector<3x128xf32> to vector<1x128xf32>
    %cst = arith.constant dense<0.000000e+00> : vector<32x128xf32>
    %23 = tpu.matmul %4, %0, %cst {dimension_numbers = #tpu.dot_dimension_numbers<[1], [0], [0], [1], [0, 0, 1, 1], [], []>} : vector<32x16xf32>, vector<16x128xf32>, vector<32x128xf32> -> vector<32x128xf32>
    %cst_30 = arith.constant dense<0.000000e+00> : vector<128x32xf32>
    %24 = tpu.matmul %1, %3, %cst_30 {dimension_numbers = #tpu.dot_dimension_numbers<[1], [0], [0], [1], [0, 0, 1, 1], [], []>} : vector<128x16xf32>, vector<16x32xf32>, vector<128x32xf32> -> vector<128x32xf32>
    %cst_31 = arith.constant dense<0.000000e+00> : vector<128x128xf32>
    %25 = tpu.matmul %8, %23, %cst_31 {dimension_numbers = #tpu.dot_dimension_numbers<[1], [0], [0], [1], [0, 0, 1, 1], [], []>} : vector<128x32xf32>, vector<32x128xf32>, vector<128x128xf32> -> vector<128x128xf32>
    %cst_32 = arith.constant dense<0.000000e+00> : vector<128x128xf32>
    %26 = tpu.matmul %6, %23, %cst_32 {dimension_numbers = #tpu.dot_dimension_numbers<[1], [0], [0], [1], [0, 0, 1, 1], [], []>} : vector<128x32xf32>, vector<32x128xf32>, vector<128x128xf32> -> vector<128x128xf32>
    %27 = arith.mulf %26, %12 : vector<128x128xf32>
    %cst_33 = arith.constant dense<0.000000e+00> : vector<128x128xf32>
    %28 = tpu.matmul %27, %10, %cst_33 {dimension_numbers = #tpu.dot_dimension_numbers<[1], [0], [0], [1], [0, 0, 1, 1], [], []>} : vector<128x128xf32>, vector<128x128xf32>, vector<128x128xf32> -> vector<128x128xf32>
    %29 = arith.addf %28, %25 : vector<128x128xf32>
    %cst_34 = arith.constant 0.000000e+00 : f32
    %30 = vector.broadcast %cst_34 : f32 to vector<128x128xf32>
    %31 = arith.cmpf ogt, %29, %30 : vector<128x128xf32>
    %cst_35 = arith.constant 2.000000e-01 : f32
    %32 = vector.broadcast %cst_35 : f32 to vector<128x128xf32>
    %33 = arith.mulf %32, %29 : vector<128x128xf32>
    %34 = arith.select %31, %29, %33 : vector<128x128xi1>, vector<128x128xf32>
    %35 = tpu.concatenate %2, %2, %2, %2 in 0 : vector<32x128xf32>, vector<32x128xf32>, vector<32x128xf32>, vector<32x128xf32> -> vector<128x128xf32>
    %cst_36 = arith.constant 0.000000e+00 : f32
    %36 = vector.broadcast %cst_36 : f32 to vector<128x128xf32>
    %37 = arith.cmpf ogt, %35, %36 : vector<128x128xf32>
    %cst_37 = arith.constant -1.000000e+30 : f32
    %38 = vector.broadcast %cst_37 : f32 to vector<128x128xf32>
    %39 = arith.select %37, %34, %38 : vector<128x128xi1>, vector<128x128xf32>
    %cst_38 = arith.constant dense<0xFF800000> : vector<128xf32>
    %40 = vector.multi_reduction <maximumf>, %39, %cst_38 [1] : vector<128x128xf32> to vector<128xf32>
    %41 = vector.shape_cast %40 : vector<128xf32> to vector<128x1xf32>
    %42 = vector.broadcast %41 : vector<128x1xf32> to vector<128x128xf32>
    %43 = arith.subf %39, %42 : vector<128x128xf32>
    %44 = math.exp %43 : vector<128x128xf32>
    %cst_39 = arith.constant dense<0.000000e+00> : vector<128x128xf32>
    %45 = tpu.matmul %44, %10, %cst_39 {dimension_numbers = #tpu.dot_dimension_numbers<[1], [0], [0], [1], [0, 0, 1, 1], [], []>} : vector<128x128xf32>, vector<128x128xf32>, vector<128x128xf32> -> vector<128x128xf32>
    %cst_40 = arith.constant dense<0.000000e+00> : vector<128x128xf32>
    %46 = tpu.matmul %24, %18, %cst_40 {dimension_numbers = #tpu.dot_dimension_numbers<[1], [0], [0], [1], [0, 0, 1, 1], [], []>} : vector<128x32xf32>, vector<32x128xf32>, vector<128x128xf32> -> vector<128x128xf32>
    %47 = arith.mulf %46, %10 : vector<128x128xf32>
    %cst_41 = arith.constant dense<0.000000e+00> : vector<128x128xf32>
    %48 = tpu.matmul %44, %47, %cst_41 {dimension_numbers = #tpu.dot_dimension_numbers<[1], [0], [0], [1], [0, 0, 1, 1], [], []>} : vector<128x128xf32>, vector<128x128xf32>, vector<128x128xf32> -> vector<128x128xf32>
    %49 = arith.mulf %48, %14 : vector<128x128xf32>
    %cst_42 = arith.constant dense<0.000000e+00> : vector<32x128xf32>
    %50 = tpu.matmul %16, %49, %cst_42 {dimension_numbers = #tpu.dot_dimension_numbers<[1], [0], [0], [1], [0, 0, 1, 1], [], []>} : vector<32x128xf32>, vector<128x128xf32>, vector<32x128xf32> -> vector<32x128xf32>
    %51 = arith.mulf %45, %14 : vector<128x128xf32>
    %cst_43 = arith.constant dense<0.000000e+00> : vector<32x128xf32>
    %52 = tpu.matmul %16, %51, %cst_43 {dimension_numbers = #tpu.dot_dimension_numbers<[1], [0], [0], [1], [0, 0, 1, 1], [], []>} : vector<32x128xf32>, vector<128x128xf32>, vector<32x128xf32> -> vector<32x128xf32>
    %53 = arith.divf %50, %52 : vector<32x128xf32>
    %54 = vector.broadcast %20 : vector<1x128xf32> to vector<32x128xf32>
    %55 = arith.addf %53, %54 : vector<32x128xf32>
    %cst_44 = arith.constant dense<0.000000e+00> : vector<32x128xf32>
    %56 = tpu.matmul %55, %10, %cst_44 {dimension_numbers = #tpu.dot_dimension_numbers<[1], [0], [0], [1], [0, 0, 1, 1], [], []>} : vector<32x128xf32>, vector<128x128xf32>, vector<32x128xf32> -> vector<32x128xf32>
    %cst_45 = arith.constant 3.125000e-02 : f32
    %57 = vector.broadcast %cst_45 : f32 to vector<32x128xf32>
    %58 = arith.mulf %56, %57 : vector<32x128xf32>
    %59 = arith.subf %55, %58 : vector<32x128xf32>
    %60 = arith.mulf %59, %59 : vector<32x128xf32>
    %cst_46 = arith.constant dense<0.000000e+00> : vector<32x128xf32>
    %61 = tpu.matmul %60, %10, %cst_46 {dimension_numbers = #tpu.dot_dimension_numbers<[1], [0], [0], [1], [0, 0, 1, 1], [], []>} : vector<32x128xf32>, vector<128x128xf32>, vector<32x128xf32> -> vector<32x128xf32>
    %cst_47 = arith.constant 3.125000e-02 : f32
    %62 = vector.broadcast %cst_47 : f32 to vector<32x128xf32>
    %63 = arith.mulf %61, %62 : vector<32x128xf32>
    %cst_48 = arith.constant 9.99999974E-6 : f32
    %64 = vector.broadcast %cst_48 : f32 to vector<32x128xf32>
    %65 = arith.addf %63, %64 : vector<32x128xf32>
    %66 = math.rsqrt %65 : vector<32x128xf32>
    %67 = arith.mulf %59, %66 : vector<32x128xf32>
    %68 = vector.broadcast %21 : vector<1x128xf32> to vector<32x128xf32>
    %69 = arith.mulf %67, %68 : vector<32x128xf32>
    %70 = vector.broadcast %22 : vector<1x128xf32> to vector<32x128xf32>
    %71 = arith.addf %69, %70 : vector<32x128xf32>
    %cst_49 = arith.constant 0.000000e+00 : f32
    %72 = vector.broadcast %cst_49 : f32 to vector<32x128xf32>
    %73 = arith.cmpf ogt, %71, %72 : vector<32x128xf32>
    %cst_50 = arith.constant 2.000000e-01 : f32
    %74 = vector.broadcast %cst_50 : f32 to vector<32x128xf32>
    %75 = arith.mulf %74, %71 : vector<32x128xf32>
    %76 = arith.select %73, %71, %75 : vector<32x128xi1>, vector<32x128xf32>
    %c0_51 = arith.constant 0 : index
    %c0_52 = arith.constant 0 : index
    %77 = vector.load %arg10[%c0_51, %c0_52] : memref<32x128xf32, #tpu.memory_space<vmem>>, vector<32x128xf32>
    tpu.vector_store %arg10[%c0_51, %c0_52], %76 {strides = array<i32>} : memref<32x128xf32, #tpu.memory_space<vmem>>, vector<32x128xf32>,
    return
  }
  func.func @transform_0(%arg0: i32) -> (i32, i32) {
    %c0_i32 = arith.constant 0 : i32
    %c0_i32_0 = arith.constant 0 : i32
    return %c0_i32, %arg0 : i32, i32
  }
  func.func @transform_1(%arg0: i32) -> (i32, i32) {
    %c0_i32 = arith.constant 0 : i32
    %c0_i32_0 = arith.constant 0 : i32
    return %arg0, %c0_i32 : i32, i32
  }
  func.func @transform_2(%arg0: i32) -> (i32, i32) {
    %c0_i32 = arith.constant 0 : i32
    %c0_i32_0 = arith.constant 0 : i32
    return %c0_i32, %arg0 : i32, i32
  }
  func.func @transform_3(%arg0: i32) -> (i32, i32) {
    %c0_i32 = arith.constant 0 : i32
    %c0_i32_0 = arith.constant 0 : i32
    %c0_i32_1 = arith.constant 0 : i32
    return %c0_i32, %c0_i32_0 : i32, i32
  }
  func.func @transform_4(%arg0: i32) -> (i32, i32) {
    %c0_i32 = arith.constant 0 : i32
    %c0_i32_0 = arith.constant 0 : i32
    %c0_i32_1 = arith.constant 0 : i32
    return %c0_i32, %c0_i32_0 : i32, i32
  }
  func.func @transform_5(%arg0: i32) -> (i32, i32, i32) {
    %c0_i32 = arith.constant 0 : i32
    %c0_i32_0 = arith.constant 0 : i32
    %c0_i32_1 = arith.constant 0 : i32
    %c0_i32_2 = arith.constant 0 : i32
    return %c0_i32, %c0_i32_0, %c0_i32_1 : i32, i32, i32
  }
  func.func @transform_6(%arg0: i32) -> (i32, i32, i32) {
    %c0_i32 = arith.constant 0 : i32
    %c0_i32_0 = arith.constant 0 : i32
    %c0_i32_1 = arith.constant 0 : i32
    %c0_i32_2 = arith.constant 0 : i32
    return %c0_i32, %c0_i32_0, %c0_i32_1 : i32, i32, i32
  }
  func.func @transform_7(%arg0: i32) -> (i32, i32, i32) {
    %c0_i32 = arith.constant 0 : i32
    %c0_i32_0 = arith.constant 0 : i32
    %c0_i32_1 = arith.constant 0 : i32
    %c0_i32_2 = arith.constant 0 : i32
    return %c0_i32, %c0_i32_0, %c0_i32_1 : i32, i32, i32
  }
  func.func @transform_8(%arg0: i32) -> (i32, i32) {
    %c0_i32 = arith.constant 0 : i32
    %c0_i32_0 = arith.constant 0 : i32
    %c0_i32_1 = arith.constant 0 : i32
    return %c0_i32, %c0_i32_0 : i32, i32
  }
  func.func @transform_9(%arg0: i32) -> (i32, i32) {
    %c0_i32 = arith.constant 0 : i32
    %c0_i32_0 = arith.constant 0 : i32
    return %c0_i32, %arg0 : i32, i32
  }
}

</mosaic_0001>

<llo_original>
// kernel: gat_conv_block.1
$region0: #{gat_conv_block.1}
  #allocation0 [shape = 'u32[]', space=smem, size = 0x4, offset = 0x4, fixed_abs, tag = 'smem constant byte address 0x4 - core index']
  #allocation1 [shape = 'u32[144,128]{1,0:T(1,128)}', space=vmem, size = 0x12000, scoped, tag = 'internal scratch']
  %s0 = inlined_call_operand.vmem [shape: f32[16,256], index: 0, kind: input, shape index: {}]
  %s1 = inlined_call_operand.vmem [shape: f32[256,16], index: 1, kind: input, shape index: {}]
  %s2 = inlined_call_operand.vmem [shape: f32[32,256], index: 2, kind: input, shape index: {}]
  %s3 = inlined_call_operand.vmem [shape: f32[16,32], index: 3, kind: input, shape index: {}]
  %s4 = inlined_call_operand.vmem [shape: f32[32,16], index: 4, kind: input, shape index: {}]
  %s5 = inlined_call_operand.vmem [shape: f32[2,128,32], index: 5, kind: input, shape index: {}]
  %s6 = inlined_call_operand.vmem [shape: f32[3,128,128], index: 6, kind: input, shape index: {}]
  %s7 = inlined_call_operand.vmem [shape: f32[2,32,128], index: 7, kind: input, shape index: {}]
  %s8 = inlined_call_operand.vmem [shape: f32[3,128], index: 8, kind: input, shape index: {}]
  %s9 = inlined_call_operand.vmem [shape: f32[32,256], index: 9, kind: output, shape index: {}]
  %s10 = sld [smem:[#allocation0]]
  $region179: #{gat_conv_block.1} parent=0
    _
  %s12 = ssub.s32 1, %s10
  %s13 = scalar_select 0, %s12, %s10
  $region1: #{gat_conv_block.1} parent=0
    #allocation2 [shape = 'u8[16384]{0}', space=vmem, size = 0x4000, scoped, tag = 'input window, operand 0']
    #allocation3 [shape = 'u8[32768]{0}', space=vmem, size = 0x8000, scoped, tag = 'input window, operand 2']
    #allocation4 [shape = 'u8[32768]{0}', space=vmem, size = 0x8000, scoped, tag = 'output window, operand 0']
    loop: start=0, step=1, limit=4
    $region2: #{gat_conv_block.1} parent=1 // loop_pre_header
      _
    $region3: #{gat_conv_block.1} parent=1 // loop_header
      %s15 = sphi 0, %s19
      %p16 = scmp.ge.s32.totalorder %s15, 4
      %s25 = sphi 0, %s27
      %s28 = sphi 0, %s25
      %s29 = sphi 0, %s28
      %s45 = sphi 0, %s29
      %s51 = sphi 0, %s53
      %s54 = sphi 0, %s51
      %s55 = sphi 0, %s54
      %s71 = sphi 0, %s55
      %s77 = sphi 0, %s79
      %s80 = sphi 0, %s77
      %s81 = sphi 0, %s80
      %s97 = sphi 0, %s81
      %s101 = sphi 0, %s101
      %s103 = sphi 0, %s101
      %s104 = sphi 0, %s103
      %s118 = sphi 0, %s104
      %s122 = sphi 0, %s122
      %s124 = sphi 0, %s122
      %s125 = sphi 0, %s124
      %s139 = sphi 0, %s125
      %s143 = sphi 0, %s143
      %s145 = sphi 0, %s143
      %s146 = sphi 0, %s145
      %s160 = sphi 0, %s146
      %s164 = sphi 0, %s164
      %s166 = sphi 0, %s164
      %s167 = sphi 0, %s166
      %s181 = sphi 0, %s167
      %s185 = sphi 0, %s185
      %s187 = sphi 0, %s185
      %s188 = sphi 0, %s187
      %s202 = sphi 0, %s188
      %s206 = sphi 0, %s206
      %s208 = sphi 0, %s206
      %s209 = sphi 0, %s208
      %s223 = sphi 0, %s209
      %s229 = sphi 0, %s231
      %s232 = sphi 0, %s229
      %s233 = sphi 0, %s232
      %s249 = sphi 0, %s233
    $region4: #{gat_conv_block.1} parent=1 // loop_header_branch
      %18 = sbr.rel (%p16) target = $region8
    $region5: #{gat_conv_block.1} parent=1 // loop_body
      %s20 = ssub.s32 %s15, 1
      %s21 = ssub.s32 %s15, 2
      %s22 = sadd.s32 %s15, 1
      %s23 = ssub.s32 %s15, %s22
      %p24 = scmp.eq.s32.totalorder %s23, 0
      %s26 = sadd.s32 %s25, 1
      %s27 = scalar_select %p24, %s25, %s26
      %p30 = pneg %p24
      %p31 = scmp.eq.s32.totalorder %s15, 1
      %p32 = por %p30, %p31
      %p33 = scmp.ne.s32.totalorder %s25, %s28
      %p34 = scmp.eq.s32.totalorder %s15, 0
      %p35 = por %p33, %p34
      %p36 = scmp.ne.s32.totalorder %s25, %s28
      %p37 = scmp.eq.s32.totalorder %s20, 1
      %p38 = por %p36, %p37
      %p39 = scmp.ne.s32.totalorder %s28, %s29
      %p40 = scmp.eq.s32.totalorder %s20, 0
      %p41 = por %p39, %p40
      %p42 = scmp.ne.s32.totalorder %s28, %s29
      %p43 = scmp.eq.s32.totalorder %s21, 1
      %p44 = por %p42, %p43
      %p46 = scmp.ne.s32.totalorder %s29, %s45
      %p47 = scmp.eq.s32.totalorder %s21, 0
      %p48 = por %p46, %p47
      %s49 = ssub.s32 %s15, %s22
      %p50 = scmp.eq.s32.totalorder %s49, 0
      %s52 = sadd.s32 %s51, 1
      %s53 = scalar_select %p50, %s51, %s52
      %p56 = pneg %p50
      %p57 = scmp.eq.s32.totalorder %s15, 1
      %p58 = por %p56, %p57
      %p59 = scmp.ne.s32.totalorder %s51, %s54
      %p60 = scmp.eq.s32.totalorder %s15, 0
      %p61 = por %p59, %p60
      %p62 = scmp.ne.s32.totalorder %s51, %s54
      %p63 = scmp.eq.s32.totalorder %s20, 1
      %p64 = por %p62, %p63
      %p65 = scmp.ne.s32.totalorder %s54, %s55
      %p66 = scmp.eq.s32.totalorder %s20, 0
      %p67 = por %p65, %p66
      %p68 = scmp.ne.s32.totalorder %s54, %s55
      %p69 = scmp.eq.s32.totalorder %s21, 1
      %p70 = por %p68, %p69
      %p72 = scmp.ne.s32.totalorder %s55, %s71
      %p73 = scmp.eq.s32.totalorder %s21, 0
      %p74 = por %p72, %p73
      %s75 = ssub.s32 %s15, %s22
      %p76 = scmp.eq.s32.totalorder %s75, 0
      %s78 = sadd.s32 %s77, 1
      %s79 = scalar_select %p76, %s77, %s78
      %p82 = pneg %p76
      %p83 = scmp.eq.s32.totalorder %s15, 1
      %p84 = por %p82, %p83
      %p85 = scmp.ne.s32.totalorder %s77, %s80
      %p86 = scmp.eq.s32.totalorder %s15, 0
      %p87 = por %p85, %p86
      %p88 = scmp.ne.s32.totalorder %s77, %s80
      %p89 = scmp.eq.s32.totalorder %s20, 1
      %p90 = por %p88, %p89
      %p91 = scmp.ne.s32.totalorder %s80, %s81
      %p92 = scmp.eq.s32.totalorder %s20, 0
      %p93 = por %p91, %p92
      %p94 = scmp.ne.s32.totalorder %s80, %s81
      %p95 = scmp.eq.s32.totalorder %s21, 1
      %p96 = por %p94, %p95
      %p98 = scmp.ne.s32.totalorder %s81, %s97
      %p99 = scmp.eq.s32.totalorder %s21, 0
      %p100 = por %p98, %p99
      %s102 = sadd.s32 %s101, 1
      %p105 = scmp.eq.s32.totalorder %s15, 1
      %p106 = scmp.ne.s32.totalorder %s101, %s103
      %p107 = scmp.eq.s32.totalorder %s15, 0
      %p108 = por %p106, %p107
      %p109 = scmp.ne.s32.totalorder %s101, %s103
      %p110 = scmp.eq.s32.totalorder %s20, 1
      %p111 = por %p109, %p110
      %p112 = scmp.ne.s32.totalorder %s103, %s104
      %p113 = scmp.eq.s32.totalorder %s20, 0
      %p114 = por %p112, %p113
      %p115 = scmp.ne.s32.totalorder %s103, %s104
      %p116 = scmp.eq.s32.totalorder %s21, 1
      %p117 = por %p115, %p116
      %p119 = scmp.ne.s32.totalorder %s104, %s118
      %p120 = scmp.eq.s32.totalorder %s21, 0
      %p121 = por %p119, %p120
      %s123 = sadd.s32 %s122, 1
      %p126 = scmp.eq.s32.totalorder %s15, 1
      %p127 = scmp.ne.s32.totalorder %s122, %s124
      %p128 = scmp.eq.s32.totalorder %s15, 0
      %p129 = por %p127, %p128
      %p130 = scmp.ne.s32.totalorder %s122, %s124
      %p131 = scmp.eq.s32.totalorder %s20, 1
      %p132 = por %p130, %p131
      %p133 = scmp.ne.s32.totalorder %s124, %s125
      %p134 = scmp.eq.s32.totalorder %s20, 0
      %p135 = por %p133, %p134
      %p136 = scmp.ne.s32.totalorder %s124, %s125
      %p137 = scmp.eq.s32.totalorder %s21, 1
      %p138 = por %p136, %p137
      %p140 = scmp.ne.s32.totalorder %s125, %s139
      %p141 = scmp.eq.s32.totalorder %s21, 0
      %p142 = por %p140, %p141
      %s144 = sadd.s32 %s143, 1
      %p147 = scmp.eq.s32.totalorder %s15, 1
      %p148 = scmp.ne.s32.totalorder %s143, %s145
      %p149 = scmp.eq.s32.totalorder %s15, 0
      %p150 = por %p148, %p149
      %p151 = scmp.ne.s32.totalorder %s143, %s145
      %p152 = scmp.eq.s32.totalorder %s20, 1
      %p153 = por %p151, %p152
      %p154 = scmp.ne.s32.totalorder %s145, %s146
      %p155 = scmp.eq.s32.totalorder %s20, 0
      %p156 = por %p154, %p155
      %p157 = scmp.ne.s32.totalorder %s145, %s146
      %p158 = scmp.eq.s32.totalorder %s21, 1
      %p159 = por %p157, %p158
      %p161 = scmp.ne.s32.totalorder %s146, %s160
      %p162 = scmp.eq.s32.totalorder %s21, 0
      %p163 = por %p161, %p162
      %s165 = sadd.s32 %s164, 1
      %p168 = scmp.eq.s32.totalorder %s15, 1
      %p169 = scmp.ne.s32.totalorder %s164, %s166
      %p170 = scmp.eq.s32.totalorder %s15, 0
      %p171 = por %p169, %p170
      %p172 = scmp.ne.s32.totalorder %s164, %s166
      %p173 = scmp.eq.s32.totalorder %s20, 1
      %p174 = por %p172, %p173
      %p175 = scmp.ne.s32.totalorder %s166, %s167
      %p176 = scmp.eq.s32.totalorder %s20, 0
      %p177 = por %p175, %p176
      %p178 = scmp.ne.s32.totalorder %s166, %s167
      %p179 = scmp.eq.s32.totalorder %s21, 1
      %p180 = por %p178, %p179
      %p182 = scmp.ne.s32.totalorder %s167, %s181
      %p183 = scmp.eq.s32.totalorder %s21, 0
      %p184 = por %p182, %p183
      %s186 = sadd.s32 %s185, 1
      %p189 = scmp.eq.s32.totalorder %s15, 1
      %p190 = scmp.ne.s32.totalorder %s185, %s187
      %p191 = scmp.eq.s32.totalorder %s15, 0
      %p192 = por %p190, %p191
      %p193 = scmp.ne.s32.totalorder %s185, %s187
      %p194 = scmp.eq.s32.totalorder %s20, 1
      %p195 = por %p193, %p194
      %p196 = scmp.ne.s32.totalorder %s187, %s188
      %p197 = scmp.eq.s32.totalorder %s20, 0
      %p198 = por %p196, %p197
      %p199 = scmp.ne.s32.totalorder %s187, %s188
      %p200 = scmp.eq.s32.totalorder %s21, 1
      %p201 = por %p199, %p200
      %p203 = scmp.ne.s32.totalorder %s188, %s202
      %p204 = scmp.eq.s32.totalorder %s21, 0
      %p205 = por %p203, %p204
      %s207 = sadd.s32 %s206, 1
      %p210 = scmp.eq.s32.totalorder %s15, 1
      %p211 = scmp.ne.s32.totalorder %s206, %s208
      %p212 = scmp.eq.s32.totalorder %s15, 0
      %p213 = por %p211, %p212
      %p214 = scmp.ne.s32.totalorder %s206, %s208
      %p215 = scmp.eq.s32.totalorder %s20, 1
      %p216 = por %p214, %p215
      %p217 = scmp.ne.s32.totalorder %s208, %s209
      %p218 = scmp.eq.s32.totalorder %s20, 0
      %p219 = por %p217, %p218
      %p220 = scmp.ne.s32.totalorder %s208, %s209
      %p221 = scmp.eq.s32.totalorder %s21, 1
      %p222 = por %p220, %p221
      %p224 = scmp.ne.s32.totalorder %s209, %s223
      %p225 = scmp.eq.s32.totalorder %s21, 0
      %p226 = por %p224, %p225
      %s227 = ssub.s32 %s15, %s22
      %p228 = scmp.eq.s32.totalorder %s227, 0
      %s230 = sadd.s32 %s229, 1
      %s231 = scalar_select %p228, %s229, %s230
      %p234 = pneg %p228
      %p235 = scmp.eq.s32.totalorder %s15, 1
      %p236 = por %p234, %p235
      %p237 = scmp.ne.s32.totalorder %s229, %s232
      %p238 = scmp.eq.s32.totalorder %s15, 0
      %p239 = por %p237, %p238
      %p240 = scmp.ne.s32.totalorder %s229, %s232
      %p241 = scmp.eq.s32.totalorder %s20, 1
      %p242 = por %p240, %p241
      %p243 = scmp.ne.s32.totalorder %s232, %s233
      %p244 = scmp.eq.s32.totalorder %s20, 0
      %p245 = por %p243, %p244
      %p246 = scmp.ne.s32.totalorder %s232, %s233
      %p247 = scmp.eq.s32.totalorder %s21, 1
      %p248 = por %p246, %p247
      %p250 = scmp.ne.s32.totalorder %s233, %s249
      %p251 = scmp.eq.s32.totalorder %s21, 0
      %p252 = por %p250, %p251
      %p253 = scmp.le.s32.totalorder 1, %s15
      %p254 = scmp.lt.s32.totalorder %s15, 3
      %p255 = pnand %p253, %p254
      %p256 = pneg %p255
      // Predicated region
      $region9: #{gat_conv_block.1} parent=5 // pred_check
        _
      $region10: #{gat_conv_block.1} parent=5 // pred_check_branch
        %258 = sbr.rel (%p255) target = $region12
      $region11: #{gat_conv_block.1} parent=5 // pred_region
        %s259 = ssub.s32 %s15, 1
        // Predicated region
        $region13: #{gat_conv_block.1} parent=11 // pred_check
          %p260 = pneg %p114
        $region14: #{gat_conv_block.1} parent=11 // pred_check_branch
          %262 = sbr.rel (%p260) target = $region16
        $region15: #{gat_conv_block.1} parent=11 // pred_region
          _
        $region16: #{gat_conv_block.1} parent=11 // pred_fallthru
          _
        // Predicated region
        $region17: #{gat_conv_block.1} parent=11 // pred_check
          %p263 = pneg %p135
        $region18: #{gat_conv_block.1} parent=11 // pred_check_branch
          %265 = sbr.rel (%p263) target = $region20
        $region19: #{gat_conv_block.1} parent=11 // pred_region
          _
        $region20: #{gat_conv_block.1} parent=11 // pred_fallthru
          _
        // Predicated region
        $region21: #{gat_conv_block.1} parent=11 // pred_check
          %p266 = pneg %p156
        $region22: #{gat_conv_block.1} parent=11 // pred_check_branch
          %268 = sbr.rel (%p266) target = $region24
        $region23: #{gat_conv_block.1} parent=11 // pred_region
          _
        $region24: #{gat_conv_block.1} parent=11 // pred_fallthru
          _
        // Predicated region
        $region25: #{gat_conv_block.1} parent=11 // pred_check
          %p269 = pneg %p177
        $region26: #{gat_conv_block.1} parent=11 // pred_check_branch
          %271 = sbr.rel (%p269) target = $region28
        $region27: #{gat_conv_block.1} parent=11 // pred_region
          _
        $region28: #{gat_conv_block.1} parent=11 // pred_fallthru
          _
        // Predicated region
        $region29: #{gat_conv_block.1} parent=11 // pred_check
          %p272 = pneg %p198
        $region30: #{gat_conv_block.1} parent=11 // pred_check_branch
          %274 = sbr.rel (%p272) target = $region32
        $region31: #{gat_conv_block.1} parent=11 // pred_region
          _
        $region32: #{gat_conv_block.1} parent=11 // pred_fallthru
          _
        // Predicated region
        $region33: #{gat_conv_block.1} parent=11 // pred_check
          %p275 = pneg %p219
        $region34: #{gat_conv_block.1} parent=11 // pred_check_branch
          %277 = sbr.rel (%p275) target = $region36
        $region35: #{gat_conv_block.1} parent=11 // pred_region
          _
        $region36: #{gat_conv_block.1} parent=11 // pred_fallthru
          _
      $region12: #{gat_conv_block.1} parent=5 // pred_fallthru
        _
      %p278 = scmp.lt.s32.totalorder %s15, 2
      // Predicated region
      $region37: #{gat_conv_block.1} parent=5 // pred_check
        %p279 = pneg %p278
      $region38: #{gat_conv_block.1} parent=5 // pred_check_branch
        %281 = sbr.rel (%p279) target = $region40
      $region39: #{gat_conv_block.1} parent=5 // pred_region
        // Predicated region
        $region41: #{gat_conv_block.1} parent=39 // pred_check
          %p282 = pneg %p35
        $region42: #{gat_conv_block.1} parent=39 // pred_check_branch
          %284 = sbr.rel (%p282) target = $region44
        $region43: #{gat_conv_block.1} parent=39 // pred_region
          %s285 = sand.u32 %s25, 1
          %s286 = sand.u32 %s25, 1
          %s287 = smul.addr %s286, 16
          %s288 = scalar_lea.vmem [#allocation2], %s287
          %s289 = smul.addr %s15, 8
          %s290 = scalar_lea.vmem %s0, %s289
          // Predicated region
          $region45: #{gat_conv_block.1} parent=43 // pred_check
            _
          $region46: #{gat_conv_block.1} parent=43 // pred_check_branch
            %292 = sbr.rel (0) target = $region48
          $region47: #{gat_conv_block.1} parent=43 // pred_region
            // Predicated region
            $region49: #{gat_conv_block.1} parent=47 // pred_check
              _
            $region50: #{gat_conv_block.1} parent=47 // pred_check_branch
              %294 = sbr.rel (0) target = $region52
            $region51: #{gat_conv_block.1} parent=47 // pred_region
              // Predicated region
              $region64: #{gat_conv_block.1} parent=51 // pred_check
                _
              $region65: #{gat_conv_block.1} parent=51 // pred_check_branch
                %312 = sbr.rel (0) target = $region67
              $region66: #{gat_conv_block.1} parent=51 // pred_region
                loop: start=0, step=1, limit=1
                $region68: #{gat_conv_block.1} parent=66 // loop_pre_header
                  _
                $region69: #{gat_conv_block.1} parent=66 // loop_header
                  %s314 = sphi 0, %s318
                  %p315 = scmp.ge.s32.totalorder %s314, 1
                  %s319 = sphi %s290, %s290
                  %s320 = sphi %s288, %s288
                $region70: #{gat_conv_block.1} parent=66 // loop_header_branch
                  %317 = sbr.rel (%p315) target = $region74
                $region71: #{gat_conv_block.1} parent=66 // loop_body
                  %v321 = vld [vmem:[%s319] sm:$0xff]
                  %322 = vst [vmem:[%s320] sm:$0xff] %v321
                  %v323 = vld [vmem:[%s319 + $0x10] sm:$0xff]
                  %324 = vst [vmem:[%s320 + $0x8] sm:$0xff] %v323
                $region72: #{gat_conv_block.1} parent=66 // loop_footer
                  %s318 = sadd.s32 1, %s314
                $region73: #{gat_conv_block.1} parent=66 // loop_footer_branch
                  %313 = sbr.rel target = $region69
                $region74: #{gat_conv_block.1} parent=66 // loop_exit
                  _
              $region67: #{gat_conv_block.1} parent=51 // pred_fallthru
                _
              // Predicated region
              $region75: #{gat_conv_block.1} parent=51 // pred_check
                _
              $region76: #{gat_conv_block.1} parent=51 // pred_check_branch
                %326 = sbr.rel target = $region78
              $region77: #{gat_conv_block.1} parent=51 // pred_region
                _
              $region78: #{gat_conv_block.1} parent=51 // pred_fallthru
                _
            $region52: #{gat_conv_block.1} parent=47 // pred_fallthru
              _
            // Predicated region
            $region53: #{gat_conv_block.1} parent=47 // pred_check
              _
            $region54: #{gat_conv_block.1} parent=47 // pred_check_branch
              %296 = sbr.rel target = $region56
            $region55: #{gat_conv_block.1} parent=47 // pred_region
              %s298 = ssub.s32 256, 1
              loop: start=0, step=1, limit=1
              $region57: #{gat_conv_block.1} parent=55 // loop_pre_header
                _
              $region58: #{gat_conv_block.1} parent=55 // loop_header
                %s300 = sphi 0, %s304
                %p301 = scmp.ge.s32.totalorder %s300, 1
                %s305 = sphi %s290, %s290
                %s306 = sphi %s288, %s288
              $region59: #{gat_conv_block.1} parent=55 // loop_header_branch
                %303 = sbr.rel (%p301) target = $region63
              $region60: #{gat_conv_block.1} parent=55 // loop_body
                %v307 = vld [vmem:[%s305] sm:%s298]
                %308 = vst [vmem:[%s306] sm:%s298] %v307
                %v309 = vld [vmem:[%s305 + $0x10] sm:%s298]
                %310 = vst [vmem:[%s306 + $0x8] sm:%s298] %v309
              $region61: #{gat_conv_block.1} parent=55 // loop_footer
                %s304 = sadd.s32 1, %s300
              $region62: #{gat_conv_block.1} parent=55 // loop_footer_branch
                %299 = sbr.rel target = $region58
              $region63: #{gat_conv_block.1} parent=55 // loop_exit
                _
            $region56: #{gat_conv_block.1} parent=47 // pred_fallthru
              _
          $region48: #{gat_conv_block.1} parent=43 // pred_fallthru
            _
          %327 = vnop
        $region44: #{gat_conv_block.1} parent=39 // pred_fallthru
          _
        // Predicated region
        $region79: #{gat_conv_block.1} parent=39 // pred_check
          %p328 = pneg %p61
        $region80: #{gat_conv_block.1} parent=39 // pred_check_branch
          %330 = sbr.rel (%p328) target = $region82
        $region81: #{gat_conv_block.1} parent=39 // pred_region
          %s331 = smul.u32 16, %s15
          %p332 = scmp.lt.s32.totalorder %s331, 31
          %s333 = scalar_select %p332, %s331, 31
          %s334 = smul.addr %s333, 8
          %s335 = scalar_lea.vmem %s1, %s334
          %s336 = smul.u32 16, %s15
        $region82: #{gat_conv_block.1} parent=39 // pred_fallthru
          _
        // Predicated region
        $region83: #{gat_conv_block.1} parent=39 // pred_check
          %p337 = pneg %p87
        $region84: #{gat_conv_block.1} parent=39 // pred_check_branch
          %339 = sbr.rel (%p337) target = $region86
        $region85: #{gat_conv_block.1} parent=39 // pred_region
          %s340 = sand.u32 %s77, 1
          %s341 = sand.u32 %s77, 1
          %s342 = smul.addr %s341, 32
          %s343 = scalar_lea.vmem [#allocation3], %s342
          %s344 = smul.addr %s15, 8
          %s345 = scalar_lea.vmem %s2, %s344
          // Predicated region
          $region87: #{gat_conv_block.1} parent=85 // pred_check
            _
          $region88: #{gat_conv_block.1} parent=85 // pred_check_branch
            %347 = sbr.rel (0) target = $region90
          $region89: #{gat_conv_block.1} parent=85 // pred_region
            // Predicated region
            $region91: #{gat_conv_block.1} parent=89 // pred_check
              _
            $region92: #{gat_conv_block.1} parent=89 // pred_check_branch
              %349 = sbr.rel (0) target = $region94
            $region93: #{gat_conv_block.1} parent=89 // pred_region
              // Predicated region
              $region106: #{gat_conv_block.1} parent=93 // pred_check
                _
              $region107: #{gat_conv_block.1} parent=93 // pred_check_branch
                %371 = sbr.rel (0) target = $region109
              $region108: #{gat_conv_block.1} parent=93 // pred_region
                loop: start=0, step=1, limit=1
                $region110: #{gat_conv_block.1} parent=108 // loop_pre_header
                  _
                $region111: #{gat_conv_block.1} parent=108 // loop_header
                  %s373 = sphi 0, %s377
                  %p374 = scmp.ge.s32.totalorder %s373, 1
                  %s378 = sphi %s345, %s345
                  %s379 = sphi %s343, %s343
                $region112: #{gat_conv_block.1} parent=108 // loop_header_branch
                  %376 = sbr.rel (%p374) target = $region116
                $region113: #{gat_conv_block.1} parent=108 // loop_body
                  %v380 = vld [vmem:[%s378] sm:$0xff]
                  %381 = vst [vmem:[%s379] sm:$0xff] %v380
                  %v382 = vld [vmem:[%s378 + $0x10] sm:$0xff]
                  %383 = vst [vmem:[%s379 + $0x8] sm:$0xff] %v382
                  %v384 = vld [vmem:[%s378 + $0x20] sm:$0xff]
                  %385 = vst [vmem:[%s379 + $0x10] sm:$0xff] %v384
                  %v386 = vld [vmem:[%s378 + $0x30] sm:$0xff]
                  %387 = vst [vmem:[%s379 + $0x18] sm:$0xff] %v386
                $region114: #{gat_conv_block.1} parent=108 // loop_footer
                  %s377 = sadd.s32 1, %s373
                $region115: #{gat_conv_block.1} parent=108 // loop_footer_branch
                  %372 = sbr.rel target = $region111
                $region116: #{gat_conv_block.1} parent=108 // loop_exit
                  _
              $region109: #{gat_conv_block.1} parent=93 // pred_fallthru
                _
              // Predicated region
              $region117: #{gat_conv_block.1} parent=93 // pred_check
                _
              $region118: #{gat_conv_block.1} parent=93 // pred_check_branch
                %389 = sbr.rel target = $region120
              $region119: #{gat_conv_block.1} parent=93 // pred_region
                _
              $region120: #{gat_conv_block.1} parent=93 // pred_fallthru
                _
            $region94: #{gat_conv_block.1} parent=89 // pred_fallthru
              _
            // Predicated region
            $region95: #{gat_conv_block.1} parent=89 // pred_check
              _
            $region96: #{gat_conv_block.1} parent=89 // pred_check_branch
              %351 = sbr.rel target = $region98
            $region97: #{gat_conv_block.1} parent=89 // pred_region
              %s353 = ssub.s32 256, 1
              loop: start=0, step=1, limit=1
              $region99: #{gat_conv_block.1} parent=97 // loop_pre_header
                _
              $region100: #{gat_conv_block.1} parent=97 // loop_header
                %s355 = sphi 0, %s359
                %p356 = scmp.ge.s32.totalorder %s355, 1
                %s360 = sphi %s345, %s345
                %s361 = sphi %s343, %s343
              $region101: #{gat_conv_block.1} parent=97 // loop_header_branch
                %358 = sbr.rel (%p356) target = $region105
              $region102: #{gat_conv_block.1} parent=97 // loop_body
                %v362 = vld [vmem:[%s360] sm:%s353]
                %363 = vst [vmem:[%s361] sm:%s353] %v362
                %v364 = vld [vmem:[%s360 + $0x10] sm:%s353]
                %365 = vst [vmem:[%s361 + $0x8] sm:%s353] %v364
                %v366 = vld [vmem:[%s360 + $0x20] sm:%s353]
                %367 = vst [vmem:[%s361 + $0x10] sm:%s353] %v366
                %v368 = vld [vmem:[%s360 + $0x30] sm:%s353]
                %369 = vst [vmem:[%s361 + $0x18] sm:%s353] %v368
              $region103: #{gat_conv_block.1} parent=97 // loop_footer
                %s359 = sadd.s32 1, %s355
              $region104: #{gat_conv_block.1} parent=97 // loop_footer_branch
                %354 = sbr.rel target = $region100
              $region105: #{gat_conv_block.1} parent=97 // loop_exit
                _
            $region98: #{gat_conv_block.1} parent=89 // pred_fallthru
              _
          $region90: #{gat_conv_block.1} parent=85 // pred_fallthru
            _
          %390 = vnop
        $region86: #{gat_conv_block.1} parent=39 // pred_fallthru
          _
      $region40: #{gat_conv_block.1} parent=5 // pred_fallthru
        _
      %p391 = scmp.le.s32.totalorder 1, %s15
      %p392 = scmp.lt.s32.totalorder %s15, 3
      %p393 = pnand %p391, %p392
      %p394 = pneg %p393
      // Predicated region
      $region121: #{gat_conv_block.1} parent=5 // pred_check
        _
      $region122: #{gat_conv_block.1} parent=5 // pred_check_branch
        %396 = sbr.rel (%p393) target = $region124
      $region123: #{gat_conv_block.1} parent=5 // pred_region
        %s397 = ssub.s32 %s15, 1
        %s398 = sand.u32 %s28, 1
        %s399 = sand.u32 %s28, 1
        %s400 = smul.addr %s399, 16
        %s401 = scalar_lea.vmem [#allocation2], %s400
        // Predicated region
        $region125: #{gat_conv_block.1} parent=123 // pred_check
          %p402 = pneg %p41
        $region126: #{gat_conv_block.1} parent=123 // pred_check_branch
          %404 = sbr.rel (%p402) target = $region128
        $region127: #{gat_conv_block.1} parent=123 // pred_region
          _
        $region128: #{gat_conv_block.1} parent=123 // pred_fallthru
          _
        %s405 = sand.u32 %s80, 1
        %s406 = sand.u32 %s80, 1
        %s407 = smul.addr %s406, 32
        %s408 = scalar_lea.vmem [#allocation3], %s407
        // Predicated region
        $region129: #{gat_conv_block.1} parent=123 // pred_check
          %p409 = pneg %p93
        $region130: #{gat_conv_block.1} parent=123 // pred_check_branch
          %411 = sbr.rel (%p409) target = $region132
        $region131: #{gat_conv_block.1} parent=123 // pred_region
          _
        $region132: #{gat_conv_block.1} parent=123 // pred_fallthru
          _
        %s412 = sand.u32 %s28, 1
        %s413 = sand.u32 %s28, 1
        %s414 = smul.addr %s413, 16
        %s415 = scalar_lea.vmem [#allocation2], %s414
        %p416 = pneg %p41
        %p417 = pneg %p38
        %s418 = smul.u32 16, %s20
        %p419 = scmp.lt.s32.totalorder %s418, 31
        %s420 = scalar_select %p419, %s418, 31
        %s421 = smul.addr %s420, 8
        %s422 = scalar_lea.vmem %s1, %s421
        %p423 = pneg %p67
        %p424 = pneg %p64
        %s425 = sand.u32 %s80, 1
        %s426 = sand.u32 %s80, 1
        %s427 = smul.addr %s426, 32
        %s428 = scalar_lea.vmem [#allocation3], %s427
        %p429 = pneg %p93
        %p430 = pneg %p90
        %p431 = pneg %p114
        %p432 = pneg %p111
        %p433 = pneg %p135
        %p434 = pneg %p132
        %p435 = pneg %p156
        %p436 = pneg %p153
        %p437 = pneg %p177
        %p438 = pneg %p174
        %p439 = pneg %p198
        %p440 = pneg %p195
        %p441 = pneg %p219
        %p442 = pneg %p216
        %p443 = pneg %p245
        %p444 = pneg %p242
        %s445 = sand.u32 %s232, 1
        %s446 = sand.u32 %s232, 1
        %s447 = smul.addr %s446, 32
        %s448 = scalar_lea.vmem [#allocation4], %s447
        %s449 = smul.u32 16, %s20
        %p450 = scmp.lt.s32.totalorder %s449, 31
        %s451 = scalar_select %p450, %s449, 31
        %s452 = smul.addr %s451, 8
        %s453 = scalar_lea.vmem %s1, %s452
        %s454 = smul.u32 16, %s20
        %v455 = vld [vmem:[%s401] sm:$0xff]
        %v456 = vld [vmem:[%s401 + $0x8] sm:$0xff]
        %v457 = vld [vmem:[%s453] sm:$0xff]
        %v458 = vld [vmem:[%s453 + $0x8] sm:$0xff]
        %v459 = vld [vmem:[%s453 + $0x10] sm:$0xff]
        %v460 = vld [vmem:[%s453 + $0x18] sm:$0xff]
        %v461 = vld [vmem:[%s453 + $0x20] sm:$0xff]
        %v462 = vld [vmem:[%s453 + $0x28] sm:$0xff]
        %v463 = vld [vmem:[%s453 + $0x30] sm:$0xff]
        %v464 = vld [vmem:[%s453 + $0x38] sm:$0xff]
        %v465 = vld [vmem:[%s453 + $0x40] sm:$0xff]
        %v466 = vld [vmem:[%s453 + $0x48] sm:$0xff]
        %v467 = vld [vmem:[%s453 + $0x50] sm:$0xff]
        %v468 = vld [vmem:[%s453 + $0x58] sm:$0xff]
        %v469 = vld [vmem:[%s453 + $0x60] sm:$0xff]
        %v470 = vld [vmem:[%s453 + $0x68] sm:$0xff]
        %v471 = vld [vmem:[%s453 + $0x70] sm:$0xff]
        %v472 = vld [vmem:[%s453 + $0x78] sm:$0xff]
        %v473 = vld [vmem:[%s408] sm:$0xff]
        %v474 = vld [vmem:[%s408 + $0x8] sm:$0xff]
        %v475 = vld [vmem:[%s408 + $0x10] sm:$0xff]
        %v476 = vld [vmem:[%s408 + $0x18] sm:$0xff]
        %v477 = vld [vmem:[%s3] sm:$0xff]
        %v478 = vld [vmem:[%s3 + $0x8] sm:$0xff]
        %v479 = vld [vmem:[%s4] sm:$0xff]
        %v480 = vld [vmem:[%s4 + $0x8] sm:$0xff]
        %v481 = vld [vmem:[%s4 + $0x10] sm:$0xff]
        %v482 = vld [vmem:[%s4 + $0x18] sm:$0xff]
        %v483 = vld [vmem:[%s5] sm:$0xff]
        %v484 = vld [vmem:[%s5 + $0x8] sm:$0xff]
        %v485 = vld [vmem:[%s5 + $0x10] sm:$0xff]
        %v486 = vld [vmem:[%s5 + $0x18] sm:$0xff]
        %v487 = vld [vmem:[%s5 + $0x20] sm:$0xff]
        %v488 = vld [vmem:[%s5 + $0x28] sm:$0xff]
        %v489 = vld [vmem:[%s5 + $0x30] sm:$0xff]
        %v490 = vld [vmem:[%s5 + $0x38] sm:$0xff]
        %v491 = vld [vmem:[%s5 + $0x40] sm:$0xff]
        %v492 = vld [vmem:[%s5 + $0x48] sm:$0xff]
        %v493 = vld [vmem:[%s5 + $0x50] sm:$0xff]
        %v494 = vld [vmem:[%s5 + $0x58] sm:$0xff]
        %v495 = vld [vmem:[%s5 + $0x60] sm:$0xff]
        %v496 = vld [vmem:[%s5 + $0x68] sm:$0xff]
        %v497 = vld [vmem:[%s5 + $0x70] sm:$0xff]
        %v498 = vld [vmem:[%s5 + $0x78] sm:$0xff]
        %s499 = scalar_lea.vmem %s5, 128
        %v500 = vld [vmem:[%s499] sm:$0xff]
        %v501 = vld [vmem:[%s499 + $0x8] sm:$0xff]
        %v502 = vld [vmem:[%s499 + $0x10] sm:$0xff]
        %v503 = vld [vmem:[%s499 + $0x18] sm:$0xff]
        %v504 = vld [vmem:[%s499 + $0x20] sm:$0xff]
        %v505 = vld [vmem:[%s499 + $0x28] sm:$0xff]
        %v506 = vld [vmem:[%s499 + $0x30] sm:$0xff]
        %v507 = vld [vmem:[%s499 + $0x38] sm:$0xff]
        %v508 = vld [vmem:[%s499 + $0x40] sm:$0xff]
        %v509 = vld [vmem:[%s499 + $0x48] sm:$0xff]
        %v510 = vld [vmem:[%s499 + $0x50] sm:$0xff]
        %v511 = vld [vmem:[%s499 + $0x58] sm:$0xff]
        %v512 = vld [vmem:[%s499 + $0x60] sm:$0xff]
        %v513 = vld [vmem:[%s499 + $0x68] sm:$0xff]
        %v514 = vld [vmem:[%s499 + $0x70] sm:$0xff]
        %v515 = vld [vmem:[%s499 + $0x78] sm:$0xff]
        %v516 = vld [vmem:[%s6] sm:$0xff]
        %v517 = vld [vmem:[%s6 + $0x8] sm:$0xff]
        %v518 = vld [vmem:[%s6 + $0x10] sm:$0xff]
        %v519 = vld [vmem:[%s6 + $0x18] sm:$0xff]
        %v520 = vld [vmem:[%s6 + $0x20] sm:$0xff]
        %v521 = vld [vmem:[%s6 + $0x28] sm:$0xff]
        %v522 = vld [vmem:[%s6 + $0x30] sm:$0xff]
        %v523 = vld [vmem:[%s6 + $0x38] sm:$0xff]
        %v524 = vld [vmem:[%s6 + $0x40] sm:$0xff]
        %v525 = vld [vmem:[%s6 + $0x48] sm:$0xff]
        %v526 = vld [vmem:[%s6 + $0x50] sm:$0xff]
        %v527 = vld [vmem:[%s6 + $0x58] sm:$0xff]
        %v528 = vld [vmem:[%s6 + $0x60] sm:$0xff]
        %v529 = vld [vmem:[%s6 + $0x68] sm:$0xff]
        %v530 = vld [vmem:[%s6 + $0x70] sm:$0xff]
        %v531 = vld [vmem:[%s6 + $0x78] sm:$0xff]
        %s532 = scalar_lea.vmem %s6, 128
        %v533 = vld [vmem:[%s532] sm:$0xff]
        %v534 = vld [vmem:[%s532 + $0x8] sm:$0xff]
        %v535 = vld [vmem:[%s532 + $0x10] sm:$0xff]
        %v536 = vld [vmem:[%s532 + $0x18] sm:$0xff]
        %v537 = vld [vmem:[%s532 + $0x20] sm:$0xff]
        %v538 = vld [vmem:[%s532 + $0x28] sm:$0xff]
        %v539 = vld [vmem:[%s532 + $0x30] sm:$0xff]
        %v540 = vld [vmem:[%s532 + $0x38] sm:$0xff]
        %v541 = vld [vmem:[%s532 + $0x40] sm:$0xff]
        %v542 = vld [vmem:[%s532 + $0x48] sm:$0xff]
        %v543 = vld [vmem:[%s532 + $0x50] sm:$0xff]
        %v544 = vld [vmem:[%s532 + $0x58] sm:$0xff]
        %v545 = vld [vmem:[%s532 + $0x60] sm:$0xff]
        %v546 = vld [vmem:[%s532 + $0x68] sm:$0xff]
        %v547 = vld [vmem:[%s532 + $0x70] sm:$0xff]
        %v548 = vld [vmem:[%s532 + $0x78] sm:$0xff]
        %s549 = scalar_lea.vmem %s6, 256
        %v550 = vld [vmem:[%s549] sm:$0xff]
        %v551 = vld [vmem:[%s549 + $0x8] sm:$0xff]
        %v552 = vld [vmem:[%s549 + $0x10] sm:$0xff]
        %v553 = vld [vmem:[%s549 + $0x18] sm:$0xff]
        %v554 = vld [vmem:[%s549 + $0x20] sm:$0xff]
        %v555 = vld [vmem:[%s549 + $0x28] sm:$0xff]
        %v556 = vld [vmem:[%s549 + $0x30] sm:$0xff]
        %v557 = vld [vmem:[%s549 + $0x38] sm:$0xff]
        %v558 = vld [vmem:[%s549 + $0x40] sm:$0xff]
        %v559 = vld [vmem:[%s549 + $0x48] sm:$0xff]
        %v560 = vld [vmem:[%s549 + $0x50] sm:$0xff]
        %v561 = vld [vmem:[%s549 + $0x58] sm:$0xff]
        %v562 = vld [vmem:[%s549 + $0x60] sm:$0xff]
        %v563 = vld [vmem:[%s549 + $0x68] sm:$0xff]
        %v564 = vld [vmem:[%s549 + $0x70] sm:$0xff]
        %v565 = vld [vmem:[%s549 + $0x78] sm:$0xff]
        %v566 = vld [vmem:[%s7] sm:$0xff]
        %v567 = vld [vmem:[%s7 + $0x8] sm:$0xff]
        %v568 = vld [vmem:[%s7 + $0x10] sm:$0xff]
        %v569 = vld [vmem:[%s7 + $0x18] sm:$0xff]
        %s570 = scalar_lea.vmem %s7, 32
        %v571 = vld [vmem:[%s570] sm:$0xff]
        %v572 = vld [vmem:[%s570 + $0x8] sm:$0xff]
        %v573 = vld [vmem:[%s570 + $0x10] sm:$0xff]
        %v574 = vld [vmem:[%s570 + $0x18] sm:$0xff]
        %v575 = vld [vmem:[%s8] sm:$0x7]
        %vm576 = vcmask 130048
        %v578 = vsel %vm576, %v479, 0
        %v581 = vsel %vm576, %v480, 0
        %v584 = vsel %vm576, %v481, 0
        %v587 = vsel %vm576, %v482, 0
        %589 = vmatprep.subr.mxu0 0.0
        %590 = vmatpush1.msra.mxu0 0.0
        %591 = vmatprep.subr.mxu0 0.0
        %592 = vmatpush1.msra.mxu0 0.0
        %593 = vmatprep.subr.mxu0 0.0
        %594 = vmatpush1.msra.mxu0 0.0
        %595 = vmatprep.subr.mxu0 0.0
        %596 = vmatpush1.msra.mxu0 0.0
        %597 = vmatprep.subr.mxu0 0.0
        %598 = vmatpush1.msra.mxu0 0.0
        %599 = vmatprep.subr.mxu0 0.0
        %600 = vmatpush1.msra.mxu0 0.0
        %601 = vmatprep.subr.mxu0 0.0
        %602 = vmatpush1.msra.mxu0 0.0
        %603 = vmatprep.subr.mxu0 0.0
        %604 = vmatpush1.msra.mxu0 0.0
        %605 = vmatprep.subr.mxu0 0.0
        %606 = vmatpush1.msra.mxu0 0.0
        %607 = vmatprep.subr.mxu0 0.0
        %608 = vmatpush1.msra.mxu0 0.0
        %609 = vmatprep.subr.mxu0 0.0
        %610 = vmatpush1.msra.mxu0 0.0
        %611 = vmatprep.subr.mxu0 0.0
        %612 = vmatpush1.msra.mxu0 0.0
        %613 = vmatprep.subr.mxu0 0.0
        %614 = vmatpush1.msra.mxu0 0.0
        %615 = vmatprep.subr.mxu0 0.0
        %616 = vmatpush1.msra.mxu0 0.0
        %617 = vmatprep.subr.mxu0 0.0
        %618 = vmatpush1.msra.mxu0 %v456
        %619 = vmatprep.subr.mxu0 0.0
        %620 = vmatpush1.msra.mxu0 %v455
        %621 = vmatprep.subr.mxu0 0.0
        %622 = vmatpush2.msra.mxu0 0.0
        %623 = vmatprep.subr.mxu0 0.0
        %624 = vmatpush2.msra.mxu0 0.0
        %625 = vmatprep.subr.mxu0 0.0
        %626 = vmatpush2.msra.mxu0 0.0
        %627 = vmatprep.subr.mxu0 0.0
        %628 = vmatpush2.msra.mxu0 0.0
        %629 = vmatprep.subr.mxu0 0.0
        %630 = vmatpush2.msra.mxu0 0.0
        %631 = vmatprep.subr.mxu0 0.0
        %632 = vmatpush2.msra.mxu0 0.0
        %633 = vmatprep.subr.mxu0 0.0
        %634 = vmatpush2.msra.mxu0 0.0
        %635 = vmatprep.subr.mxu0 0.0
        %636 = vmatpush2.msra.mxu0 0.0
        %637 = vmatprep.subr.mxu0 0.0
        %638 = vmatpush2.msra.mxu0 0.0
        %639 = vmatprep.subr.mxu0 0.0
        %640 = vmatpush2.msra.mxu0 0.0
        %641 = vmatprep.subr.mxu0 0.0
        %642 = vmatpush2.msra.mxu0 0.0
        %643 = vmatprep.subr.mxu0 0.0
        %644 = vmatpush2.msra.mxu0 0.0
        %645 = vmatprep.subr.mxu0 0.0
        %646 = vmatpush2.msra.mxu0 0.0
        %647 = vmatprep.subr.mxu0 0.0
        %648 = vmatpush2.msra.mxu0 0.0
        %649 = vmatprep.subr.mxu0 0.0
        %650 = vmatpush2.msra.mxu0 0.0
        %651 = vmatprep.subr.mxu0 0.0
        %652 = vmatpush2.msra.mxu0 0.0
        %653 = vmatprep.mubr.f32.mxu0 0.0
        %654 = vmatmul.mubr.f32.gmra.mxu0 %v578
        %v655 = vpop.f32.mrf.mxu0
        %v656 = vadd.f32 0.0, %v655
        %v657 = vpop.f32.mrf.mxu0
        %658 = vmatprep.mubr.f32.mxu0 0.0
        %659 = vmatmul.mubr.f32.gmra.mxu0 %v581
        %v660 = vpop.f32.mrf.mxu0
        %v661 = vadd.f32 0.0, %v660
        %v662 = vpop.f32.mrf.mxu0
        %663 = vmatprep.mubr.f32.mxu0 0.0
        %664 = vmatmul.mubr.f32.gmra.mxu0 %v584
        %v665 = vpop.f32.mrf.mxu0
        %v666 = vadd.f32 0.0, %v665
        %v667 = vpop.f32.mrf.mxu0
        %668 = vmatprep.mubr.f32.mxu0 0.0
        %669 = vmatmul.mubr.f32.gmra.mxu0 %v587
        %v670 = vpop.f32.mrf.mxu0
        %v671 = vadd.f32 0.0, %v670
        %v672 = vpop.f32.mrf.mxu0
        %673 = vdwg.mxu0
        %v675 = vsel %vm576, %v457, 0
        %v678 = vsel %vm576, %v458, 0
        %v681 = vsel %vm576, %v459, 0
        %v684 = vsel %vm576, %v460, 0
        %v687 = vsel %vm576, %v461, 0
        %v690 = vsel %vm576, %v462, 0
        %v693 = vsel %vm576, %v463, 0
        %v696 = vsel %vm576, %v464, 0
        %v699 = vsel %vm576, %v465, 0
        %v702 = vsel %vm576, %v466, 0
        %v705 = vsel %vm576, %v467, 0
        %v708 = vsel %vm576, %v468, 0
        %v711 = vsel %vm576, %v469, 0
        %v714 = vsel %vm576, %v470, 0
        %v717 = vsel %vm576, %v471, 0
        %v720 = vsel %vm576, %v472, 0
        %722 = vmatprep.subr.mxu0 0.0
        %723 = vmatpush1.msra.mxu0 0.0
        %724 = vmatprep.subr.mxu0 0.0
        %725 = vmatpush1.msra.mxu0 0.0
        %726 = vmatprep.subr.mxu0 0.0
        %727 = vmatpush1.msra.mxu0 0.0
        %728 = vmatprep.subr.mxu0 0.0
        %729 = vmatpush1.msra.mxu0 0.0
        %730 = vmatprep.subr.mxu0 0.0
        %731 = vmatpush1.msra.mxu0 0.0
        %732 = vmatprep.subr.mxu0 0.0
        %733 = vmatpush1.msra.mxu0 0.0
        %734 = vmatprep.subr.mxu0 0.0
        %735 = vmatpush1.msra.mxu0 0.0
        %736 = vmatprep.subr.mxu0 0.0
        %737 = vmatpush1.msra.mxu0 0.0
        %738 = vmatprep.subr.mxu0 0.0
        %739 = vmatpush1.msra.mxu0 0.0
        %740 = vmatprep.subr.mxu0 0.0
        %741 = vmatpush1.msra.mxu0 0.0
        %742 = vmatprep.subr.mxu0 0.0
        %743 = vmatpush1.msra.mxu0 0.0
        %744 = vmatprep.subr.mxu0 0.0
        %745 = vmatpush1.msra.mxu0 0.0
        %746 = vmatprep.subr.mxu0 0.0
        %747 = vmatpush1.msra.mxu0 0.0
        %748 = vmatprep.subr.mxu0 0.0
        %749 = vmatpush1.msra.mxu0 0.0
        %750 = vmatprep.subr.mxu0 0.0
        %751 = vmatpush1.msra.mxu0 %v478
        %752 = vmatprep.subr.mxu0 0.0
        %753 = vmatpush1.msra.mxu0 %v477
        %754 = vmatprep.subr.mxu0 0.0
        %755 = vmatpush2.msra.mxu0 0.0
        %756 = vmatprep.subr.mxu0 0.0
        %757 = vmatpush2.msra.mxu0 0.0
        %758 = vmatprep.subr.mxu0 0.0
        %759 = vmatpush2.msra.mxu0 0.0
        %760 = vmatprep.subr.mxu0 0.0
        %761 = vmatpush2.msra.mxu0 0.0
        %762 = vmatprep.subr.mxu0 0.0
        %763 = vmatpush2.msra.mxu0 0.0
        %764 = vmatprep.subr.mxu0 0.0
        %765 = vmatpush2.msra.mxu0 0.0
        %766 = vmatprep.subr.mxu0 0.0
        %767 = vmatpush2.msra.mxu0 0.0
        %768 = vmatprep.subr.mxu0 0.0
        %769 = vmatpush2.msra.mxu0 0.0
        %770 = vmatprep.subr.mxu0 0.0
        %771 = vmatpush2.msra.mxu0 0.0
        %772 = vmatprep.subr.mxu0 0.0
        %773 = vmatpush2.msra.mxu0 0.0
        %774 = vmatprep.subr.mxu0 0.0
        %775 = vmatpush2.msra.mxu0 0.0
        %776 = vmatprep.subr.mxu0 0.0
        %777 = vmatpush2.msra.mxu0 0.0
        %778 = vmatprep.subr.mxu0 0.0
        %779 = vmatpush2.msra.mxu0 0.0
        %780 = vmatprep.subr.mxu0 0.0
        %781 = vmatpush2.msra.mxu0 0.0
        %782 = vmatprep.subr.mxu0 0.0
        %783 = vmatpush2.msra.mxu0 0.0
        %784 = vmatprep.subr.mxu0 0.0
        %785 = vmatpush2.msra.mxu0 0.0
        %786 = vmatprep.mubr.f32.mxu0 0.0
        %787 = vmatmul.mubr.f32.gmra.mxu0 %v675
        %v788 = vpop.f32.mrf.mxu0
        %v789 = vadd.f32 0.0, %v788
        %v790 = vpop.f32.mrf.mxu0
        %791 = vmatprep.mubr.f32.mxu0 0.0
        %792 = vmatmul.mubr.f32.gmra.mxu0 %v678
        %v793 = vpop.f32.mrf.mxu0
        %v794 = vadd.f32 0.0, %v793
        %v795 = vpop.f32.mrf.mxu0
        %796 = vmatprep.mubr.f32.mxu0 0.0
        %797 = vmatmul.mubr.f32.gmra.mxu0 %v681
        %v798 = vpop.f32.mrf.mxu0
        %v799 = vadd.f32 0.0, %v798
        %v800 = vpop.f32.mrf.mxu0
        %801 = vmatprep.mubr.f32.mxu0 0.0
        %802 = vmatmul.mubr.f32.gmra.mxu0 %v684
        %v803 = vpop.f32.mrf.mxu0
        %v804 = vadd.f32 0.0, %v803
        %v805 = vpop.f32.mrf.mxu0
        %806 = vmatprep.mubr.f32.mxu0 0.0
        %807 = vmatmul.mubr.f32.gmra.mxu0 %v687
        %v808 = vpop.f32.mrf.mxu0
        %v809 = vadd.f32 0.0, %v808
        %v810 = vpop.f32.mrf.mxu0
        %811 = vmatprep.mubr.f32.mxu0 0.0
        %812 = vmatmul.mubr.f32.gmra.mxu0 %v690
        %v813 = vpop.f32.mrf.mxu0
        %v814 = vadd.f32 0.0, %v813
        %v815 = vpop.f32.mrf.mxu0
        %816 = vmatprep.mubr.f32.mxu0 0.0
        %817 = vmatmul.mubr.f32.gmra.mxu0 %v693
        %v818 = vpop.f32.mrf.mxu0
        %v819 = vadd.f32 0.0, %v818
        %v820 = vpop.f32.mrf.mxu0
        %821 = vmatprep.mubr.f32.mxu0 0.0
        %822 = vmatmul.mubr.f32.gmra.mxu0 %v696
        %v823 = vpop.f32.mrf.mxu0
        %v824 = vadd.f32 0.0, %v823
        %v825 = vpop.f32.mrf.mxu0
        %826 = vmatprep.mubr.f32.mxu0 0.0
        %827 = vmatmul.mubr.f32.gmra.mxu0 %v699
        %v828 = vpop.f32.mrf.mxu0
        %v829 = vadd.f32 0.0, %v828
        %v830 = vpop.f32.mrf.mxu0
        %831 = vmatprep.mubr.f32.mxu0 0.0
        %832 = vmatmul.mubr.f32.gmra.mxu0 %v702
        %v833 = vpop.f32.mrf.mxu0
        %v834 = vadd.f32 0.0, %v833
        %v835 = vpop.f32.mrf.mxu0
        %836 = vmatprep.mubr.f32.mxu0 0.0
        %837 = vmatmul.mubr.f32.gmra.mxu0 %v705
        %v838 = vpop.f32.mrf.mxu0
        %v839 = vadd.f32 0.0, %v838
        %v840 = vpop.f32.mrf.mxu0
        %841 = vmatprep.mubr.f32.mxu0 0.0
        %842 = vmatmul.mubr.f32.gmra.mxu0 %v708
        %v843 = vpop.f32.mrf.mxu0
        %v844 = vadd.f32 0.0, %v843
        %v845 = vpop.f32.mrf.mxu0
        %846 = vmatprep.mubr.f32.mxu0 0.0
        %847 = vmatmul.mubr.f32.gmra.mxu0 %v711
        %v848 = vpop.f32.mrf.mxu0
        %v849 = vadd.f32 0.0, %v848
        %v850 = vpop.f32.mrf.mxu0
        %851 = vmatprep.mubr.f32.mxu0 0.0
        %852 = vmatmul.mubr.f32.gmra.mxu0 %v714
        %v853 = vpop.f32.mrf.mxu0
        %v854 = vadd.f32 0.0, %v853
        %v855 = vpop.f32.mrf.mxu0
        %856 = vmatprep.mubr.f32.mxu0 0.0
        %857 = vmatmul.mubr.f32.gmra.mxu0 %v717
        %v858 = vpop.f32.mrf.mxu0
        %v859 = vadd.f32 0.0, %v858
        %v860 = vpop.f32.mrf.mxu0
        %861 = vmatprep.mubr.f32.mxu0 0.0
        %862 = vmatmul.mubr.f32.gmra.mxu0 %v720
        %v863 = vpop.f32.mrf.mxu0
        %v864 = vadd.f32 0.0, %v863
        %v865 = vpop.f32.mrf.mxu0
        %866 = vdwg.mxu0
        %vm867 = vcmask 261120
        %v869 = vsel %vm867, %v500, 0
        %v872 = vsel %vm867, %v501, 0
        %v875 = vsel %vm867, %v502, 0
        %v878 = vsel %vm867, %v503, 0
        %v881 = vsel %vm867, %v504, 0
        %v884 = vsel %vm867, %v505, 0
        %v887 = vsel %vm867, %v506, 0
        %v890 = vsel %vm867, %v507, 0
        %v893 = vsel %vm867, %v508, 0
        %v896 = vsel %vm867, %v509, 0
        %v899 = vsel %vm867, %v510, 0
        %v902 = vsel %vm867, %v511, 0
        %v905 = vsel %vm867, %v512, 0
        %v908 = vsel %vm867, %v513, 0
        %v911 = vsel %vm867, %v514, 0
        %v914 = vsel %vm867, %v515, 0
        %916 = vmatprep.subr.mxu0 0.0
        %917 = vmatpush1.msra.mxu0 0.0
        %918 = vmatprep.subr.mxu0 0.0
        %919 = vmatpush1.msra.mxu0 0.0
        %920 = vmatprep.subr.mxu0 0.0
        %921 = vmatpush1.msra.mxu0 0.0
        %922 = vmatprep.subr.mxu0 0.0
        %923 = vmatpush1.msra.mxu0 0.0
        %924 = vmatprep.subr.mxu0 0.0
        %925 = vmatpush1.msra.mxu0 0.0
        %926 = vmatprep.subr.mxu0 0.0
        %927 = vmatpush1.msra.mxu0 0.0
        %928 = vmatprep.subr.mxu0 0.0
        %929 = vmatpush1.msra.mxu0 0.0
        %930 = vmatprep.subr.mxu0 0.0
        %931 = vmatpush1.msra.mxu0 0.0
        %932 = vmatprep.subr.mxu0 0.0
        %933 = vmatpush1.msra.mxu0 0.0
        %934 = vmatprep.subr.mxu0 0.0
        %935 = vmatpush1.msra.mxu0 0.0
        %936 = vmatprep.subr.mxu0 0.0
        %937 = vmatpush1.msra.mxu0 0.0
        %938 = vmatprep.subr.mxu0 0.0
        %939 = vmatpush1.msra.mxu0 0.0
        %940 = vmatprep.subr.mxu0 0.0
        %941 = vmatpush1.msra.mxu0 %v671
        %942 = vmatprep.subr.mxu0 0.0
        %943 = vmatpush1.msra.mxu0 %v666
        %944 = vmatprep.subr.mxu0 0.0
        %945 = vmatpush1.msra.mxu0 %v661
        %946 = vmatprep.subr.mxu0 0.0
        %947 = vmatpush1.msra.mxu0 %v656
        %948 = vmatprep.subr.mxu0 0.0
        %949 = vmatpush2.msra.mxu0 0.0
        %950 = vmatprep.subr.mxu0 0.0
        %951 = vmatpush2.msra.mxu0 0.0
        %952 = vmatprep.subr.mxu0 0.0
        %953 = vmatpush2.msra.mxu0 0.0
        %954 = vmatprep.subr.mxu0 0.0
        %955 = vmatpush2.msra.mxu0 0.0
        %956 = vmatprep.subr.mxu0 0.0
        %957 = vmatpush2.msra.mxu0 0.0
        %958 = vmatprep.subr.mxu0 0.0
        %959 = vmatpush2.msra.mxu0 0.0
        %960 = vmatprep.subr.mxu0 0.0
        %961 = vmatpush2.msra.mxu0 0.0
        %962 = vmatprep.subr.mxu0 0.0
        %963 = vmatpush2.msra.mxu0 0.0
        %964 = vmatprep.subr.mxu0 0.0
        %965 = vmatpush2.msra.mxu0 0.0
        %966 = vmatprep.subr.mxu0 0.0
        %967 = vmatpush2.msra.mxu0 0.0
        %968 = vmatprep.subr.mxu0 0.0
        %969 = vmatpush2.msra.mxu0 0.0
        %970 = vmatprep.subr.mxu0 0.0
        %971 = vmatpush2.msra.mxu0 0.0
        %972 = vmatprep.subr.mxu0 0.0
        %973 = vmatpush2.msra.mxu0 0.0
        %974 = vmatprep.subr.mxu0 0.0
        %975 = vmatpush2.msra.mxu0 0.0
        %976 = vmatprep.subr.mxu0 0.0
        %977 = vmatpush2.msra.mxu0 0.0
        %978 = vmatprep.subr.mxu0 0.0
        %979 = vmatpush2.msra.mxu0 0.0
        %980 = vmatprep.mubr.f32.mxu0 0.0
        %981 = vmatmul.mubr.f32.gmra.mxu0 %v869
        %v982 = vpop.f32.mrf.mxu0
        %v983 = vadd.f32 0.0, %v982
        %v984 = vpop.f32.mrf.mxu0
        %985 = vmatprep.mubr.f32.mxu0 0.0
        %986 = vmatmul.mubr.f32.gmra.mxu0 %v872
        %v987 = vpop.f32.mrf.mxu0
        %v988 = vadd.f32 0.0, %v987
        %v989 = vpop.f32.mrf.mxu0
        %990 = vmatprep.mubr.f32.mxu0 0.0
        %991 = vmatmul.mubr.f32.gmra.mxu0 %v875
        %v992 = vpop.f32.mrf.mxu0
        %v993 = vadd.f32 0.0, %v992
        %v994 = vpop.f32.mrf.mxu0
        %995 = vmatprep.mubr.f32.mxu0 0.0
        %996 = vmatmul.mubr.f32.gmra.mxu0 %v878
        %v997 = vpop.f32.mrf.mxu0
        %v998 = vadd.f32 0.0, %v997
        %v999 = vpop.f32.mrf.mxu0
        %1000 = vmatprep.mubr.f32.mxu0 0.0
        %1001 = vmatmul.mubr.f32.gmra.mxu0 %v881
        %v1002 = vpop.f32.mrf.mxu0
        %v1003 = vadd.f32 0.0, %v1002
        %v1004 = vpop.f32.mrf.mxu0
        %1005 = vmatprep.mubr.f32.mxu0 0.0
        %1006 = vmatmul.mubr.f32.gmra.mxu0 %v884
        %v1007 = vpop.f32.mrf.mxu0
        %v1008 = vadd.f32 0.0, %v1007
        %v1009 = vpop.f32.mrf.mxu0
        %1010 = vmatprep.mubr.f32.mxu0 0.0
        %1011 = vmatmul.mubr.f32.gmra.mxu0 %v887
        %v1012 = vpop.f32.mrf.mxu0
        %v1013 = vadd.f32 0.0, %v1012
        %v1014 = vpop.f32.mrf.mxu0
        %1015 = vmatprep.mubr.f32.mxu0 0.0
        %1016 = vmatmul.mubr.f32.gmra.mxu0 %v890
        %v1017 = vpop.f32.mrf.mxu0
        %v1018 = vadd.f32 0.0, %v1017
        %v1019 = vpop.f32.mrf.mxu0
        %1020 = vmatprep.mubr.f32.mxu0 0.0
        %1021 = vmatmul.mubr.f32.gmra.mxu0 %v893
        %v1022 = vpop.f32.mrf.mxu0
        %v1023 = vadd.f32 0.0, %v1022
        %v1024 = vpop.f32.mrf.mxu0
        %1025 = vmatprep.mubr.f32.mxu0 0.0
        %1026 = vmatmul.mubr.f32.gmra.mxu0 %v896
        %v1027 = vpop.f32.mrf.mxu0
        %v1028 = vadd.f32 0.0, %v1027
        %v1029 = vpop.f32.mrf.mxu0
        %1030 = vmatprep.mubr.f32.mxu0 0.0
        %1031 = vmatmul.mubr.f32.gmra.mxu0 %v899
        %v1032 = vpop.f32.mrf.mxu0
        %v1033 = vadd.f32 0.0, %v1032
        %v1034 = vpop.f32.mrf.mxu0
        %1035 = vmatprep.mubr.f32.mxu0 0.0
        %1036 = vmatmul.mubr.f32.gmra.mxu0 %v902
        %v1037 = vpop.f32.mrf.mxu0
        %v1038 = vadd.f32 0.0, %v1037
        %v1039 = vpop.f32.mrf.mxu0
        %1040 = vmatprep.mubr.f32.mxu0 0.0
        %1041 = vmatmul.mubr.f32.gmra.mxu0 %v905
        %v1042 = vpop.f32.mrf.mxu0
        %v1043 = vadd.f32 0.0, %v1042
        %v1044 = vpop.f32.mrf.mxu0
        %1045 = vmatprep.mubr.f32.mxu0 0.0
        %1046 = vmatmul.mubr.f32.gmra.mxu0 %v908
        %v1047 = vpop.f32.mrf.mxu0
        %v1048 = vadd.f32 0.0, %v1047
        %v1049 = vpop.f32.mrf.mxu0
        %1050 = vmatprep.mubr.f32.mxu0 0.0
        %1051 = vmatmul.mubr.f32.gmra.mxu0 %v911
        %v1052 = vpop.f32.mrf.mxu0
        %v1053 = vadd.f32 0.0, %v1052
        %v1054 = vpop.f32.mrf.mxu0
        %1055 = vmatprep.mubr.f32.mxu0 0.0
        %1056 = vmatmul.mubr.f32.gmra.mxu0 %v914
        %v1057 = vpop.f32.mrf.mxu0
        %v1058 = vadd.f32 0.0, %v1057
        %v1059 = vpop.f32.mrf.mxu0
        %1060 = vdwg.mxu0
        %v1062 = vsel %vm867, %v483, 0
        %v1065 = vsel %vm867, %v484, 0
        %v1068 = vsel %vm867, %v485, 0
        %v1071 = vsel %vm867, %v486, 0
        %v1074 = vsel %vm867, %v487, 0
        %v1077 = vsel %vm867, %v488, 0
        %v1080 = vsel %vm867, %v489, 0
        %v1083 = vsel %vm867, %v490, 0
        %v1086 = vsel %vm867, %v491, 0
        %v1089 = vsel %vm867, %v492, 0
        %v1092 = vsel %vm867, %v493, 0
        %v1095 = vsel %vm867, %v494, 0
        %v1098 = vsel %vm867, %v495, 0
        %v1101 = vsel %vm867, %v496, 0
        %v1104 = vsel %vm867, %v497, 0
        %v1107 = vsel %vm867, %v498, 0
        %1109 = vmatprep.subr.mxu0 0.0
        %1110 = vmatpush1.msra.mxu0 0.0
        %1111 = vmatprep.subr.mxu0 0.0
        %1112 = vmatpush1.msra.mxu0 0.0
        %1113 = vmatprep.subr.mxu0 0.0
        %1114 = vmatpush1.msra.mxu0 0.0
        %1115 = vmatprep.subr.mxu0 0.0
        %1116 = vmatpush1.msra.mxu0 0.0
        %1117 = vmatprep.subr.mxu0 0.0
        %1118 = vmatpush1.msra.mxu0 0.0
        %1119 = vmatprep.subr.mxu0 0.0
        %1120 = vmatpush1.msra.mxu0 0.0
        %1121 = vmatprep.subr.mxu0 0.0
        %1122 = vmatpush1.msra.mxu0 0.0
        %1123 = vmatprep.subr.mxu0 0.0
        %1124 = vmatpush1.msra.mxu0 0.0
        %1125 = vmatprep.subr.mxu0 0.0
        %1126 = vmatpush1.msra.mxu0 0.0
        %1127 = vmatprep.subr.mxu0 0.0
        %1128 = vmatpush1.msra.mxu0 0.0
        %1129 = vmatprep.subr.mxu0 0.0
        %1130 = vmatpush1.msra.mxu0 0.0
        %1131 = vmatprep.subr.mxu0 0.0
        %1132 = vmatpush1.msra.mxu0 0.0
        %1133 = vmatprep.subr.mxu0 0.0
        %1134 = vmatpush1.msra.mxu0 %v671
        %1135 = vmatprep.subr.mxu0 0.0
        %1136 = vmatpush1.msra.mxu0 %v666
        %1137 = vmatprep.subr.mxu0 0.0
        %1138 = vmatpush1.msra.mxu0 %v661
        %1139 = vmatprep.subr.mxu0 0.0
        %1140 = vmatpush1.msra.mxu0 %v656
        %1141 = vmatprep.subr.mxu0 0.0
        %1142 = vmatpush2.msra.mxu0 0.0
        %1143 = vmatprep.subr.mxu0 0.0
        %1144 = vmatpush2.msra.mxu0 0.0
        %1145 = vmatprep.subr.mxu0 0.0
        %1146 = vmatpush2.msra.mxu0 0.0
        %1147 = vmatprep.subr.mxu0 0.0
        %1148 = vmatpush2.msra.mxu0 0.0
        %1149 = vmatprep.subr.mxu0 0.0
        %1150 = vmatpush2.msra.mxu0 0.0
        %1151 = vmatprep.subr.mxu0 0.0
        %1152 = vmatpush2.msra.mxu0 0.0
        %1153 = vmatprep.subr.mxu0 0.0
        %1154 = vmatpush2.msra.mxu0 0.0
        %1155 = vmatprep.subr.mxu0 0.0
        %1156 = vmatpush2.msra.mxu0 0.0
        %1157 = vmatprep.subr.mxu0 0.0
        %1158 = vmatpush2.msra.mxu0 0.0
        %1159 = vmatprep.subr.mxu0 0.0
        %1160 = vmatpush2.msra.mxu0 0.0
        %1161 = vmatprep.subr.mxu0 0.0
        %1162 = vmatpush2.msra.mxu0 0.0
        %1163 = vmatprep.subr.mxu0 0.0
        %1164 = vmatpush2.msra.mxu0 0.0
        %1165 = vmatprep.subr.mxu0 0.0
        %1166 = vmatpush2.msra.mxu0 0.0
        %1167 = vmatprep.subr.mxu0 0.0
        %1168 = vmatpush2.msra.mxu0 0.0
        %1169 = vmatprep.subr.mxu0 0.0
        %1170 = vmatpush2.msra.mxu0 0.0
        %1171 = vmatprep.subr.mxu0 0.0
        %1172 = vmatpush2.msra.mxu0 0.0
        %1173 = vmatprep.mubr.f32.mxu0 0.0
        %1174 = vmatmul.mubr.f32.gmra.mxu0 %v1062
        %v1175 = vpop.f32.mrf.mxu0
        %v1176 = vadd.f32 0.0, %v1175
        %v1177 = vpop.f32.mrf.mxu0
        %1178 = vmatprep.mubr.f32.mxu0 0.0
        %1179 = vmatmul.mubr.f32.gmra.mxu0 %v1065
        %v1180 = vpop.f32.mrf.mxu0
        %v1181 = vadd.f32 0.0, %v1180
        %v1182 = vpop.f32.mrf.mxu0
        %1183 = vmatprep.mubr.f32.mxu0 0.0
        %1184 = vmatmul.mubr.f32.gmra.mxu0 %v1068
        %v1185 = vpop.f32.mrf.mxu0
        %v1186 = vadd.f32 0.0, %v1185
        %v1187 = vpop.f32.mrf.mxu0
        %1188 = vmatprep.mubr.f32.mxu0 0.0
        %1189 = vmatmul.mubr.f32.gmra.mxu0 %v1071
        %v1190 = vpop.f32.mrf.mxu0
        %v1191 = vadd.f32 0.0, %v1190
        %v1192 = vpop.f32.mrf.mxu0
        %1193 = vmatprep.mubr.f32.mxu0 0.0
        %1194 = vmatmul.mubr.f32.gmra.mxu0 %v1074
        %v1195 = vpop.f32.mrf.mxu0
        %v1196 = vadd.f32 0.0, %v1195
        %v1197 = vpop.f32.mrf.mxu0
        %1198 = vmatprep.mubr.f32.mxu0 0.0
        %1199 = vmatmul.mubr.f32.gmra.mxu0 %v1077
        %v1200 = vpop.f32.mrf.mxu0
        %v1201 = vadd.f32 0.0, %v1200
        %v1202 = vpop.f32.mrf.mxu0
        %1203 = vmatprep.mubr.f32.mxu0 0.0
        %1204 = vmatmul.mubr.f32.gmra.mxu0 %v1080
        %v1205 = vpop.f32.mrf.mxu0
        %v1206 = vadd.f32 0.0, %v1205
        %v1207 = vpop.f32.mrf.mxu0
        %1208 = vmatprep.mubr.f32.mxu0 0.0
        %1209 = vmatmul.mubr.f32.gmra.mxu0 %v1083
        %v1210 = vpop.f32.mrf.mxu0
        %v1211 = vadd.f32 0.0, %v1210
        %v1212 = vpop.f32.mrf.mxu0
        %1213 = vmatprep.mubr.f32.mxu0 0.0
        %1214 = vmatmul.mubr.f32.gmra.mxu0 %v1086
        %v1215 = vpop.f32.mrf.mxu0
        %v1216 = vadd.f32 0.0, %v1215
        %v1217 = vpop.f32.mrf.mxu0
        %1218 = vmatprep.mubr.f32.mxu0 0.0
        %1219 = vmatmul.mubr.f32.gmra.mxu0 %v1089
        %v1220 = vpop.f32.mrf.mxu0
        %v1221 = vadd.f32 0.0, %v1220
        %v1222 = vpop.f32.mrf.mxu0
        %1223 = vmatprep.mubr.f32.mxu0 0.0
        %1224 = vmatmul.mubr.f32.gmra.mxu0 %v1092
        %v1225 = vpop.f32.mrf.mxu0
        %v1226 = vadd.f32 0.0, %v1225
        %v1227 = vpop.f32.mrf.mxu0
        %1228 = vmatprep.mubr.f32.mxu0 0.0
        %1229 = vmatmul.mubr.f32.gmra.mxu0 %v1095
        %v1230 = vpop.f32.mrf.mxu0
        %v1231 = vadd.f32 0.0, %v1230
        %v1232 = vpop.f32.mrf.mxu0
        %1233 = vmatprep.mubr.f32.mxu0 0.0
        %1234 = vmatmul.mubr.f32.gmra.mxu0 %v1098
        %v1235 = vpop.f32.mrf.mxu0
        %v1236 = vadd.f32 0.0, %v1235
        %v1237 = vpop.f32.mrf.mxu0
        %1238 = vmatprep.mubr.f32.mxu0 0.0
        %1239 = vmatmul.mubr.f32.gmra.mxu0 %v1101
        %v1240 = vpop.f32.mrf.mxu0
        %v1241 = vadd.f32 0.0, %v1240
        %v1242 = vpop.f32.mrf.mxu0
        %1243 = vmatprep.mubr.f32.mxu0 0.0
        %1244 = vmatmul.mubr.f32.gmra.mxu0 %v1104
        %v1245 = vpop.f32.mrf.mxu0
        %v1246 = vadd.f32 0.0, %v1245
        %v1247 = vpop.f32.mrf.mxu0
        %1248 = vmatprep.mubr.f32.mxu0 0.0
        %1249 = vmatmul.mubr.f32.gmra.mxu0 %v1107
        %v1250 = vpop.f32.mrf.mxu0
        %v1251 = vadd.f32 0.0, %v1250
        %v1252 = vpop.f32.mrf.mxu0
        %1253 = vdwg.mxu0
        %v1254 = vmul.f32 %v1176, %v533
        %v1255 = vmul.f32 %v1181, %v534
        %v1256 = vmul.f32 %v1186, %v535
        %v1257 = vmul.f32 %v1191, %v536
        %v1258 = vmul.f32 %v1196, %v537
        %v1259 = vmul.f32 %v1201, %v538
        %v1260 = vmul.f32 %v1206, %v539
        %v1261 = vmul.f32 %v1211, %v540
        %v1262 = vmul.f32 %v1216, %v541
        %v1263 = vmul.f32 %v1221, %v542
        %v1264 = vmul.f32 %v1226, %v543
        %v1265 = vmul.f32 %v1231, %v544
        %v1266 = vmul.f32 %v1236, %v545
        %v1267 = vmul.f32 %v1241, %v546
        %v1268 = vmul.f32 %v1246, %v547
        %v1269 = vmul.f32 %v1251, %v548
        %1270 = vmatprep.subr.mxu0 0.0
        %1271 = vmatpush1.msra.mxu0 %v531
        %1272 = vmatprep.subr.mxu0 0.0
        %1273 = vmatpush1.msra.mxu0 %v530
        %1274 = vmatprep.subr.mxu0 0.0
        %1275 = vmatpush1.msra.mxu0 %v529
        %1276 = vmatprep.subr.mxu0 0.0
        %1277 = vmatpush1.msra.mxu0 %v528
        %1278 = vmatprep.subr.mxu0 0.0
        %1279 = vmatpush1.msra.mxu0 %v527
        %1280 = vmatprep.subr.mxu0 0.0
        %1281 = vmatpush1.msra.mxu0 %v526
        %1282 = vmatprep.subr.mxu0 0.0
        %1283 = vmatpush1.msra.mxu0 %v525
        %1284 = vmatprep.subr.mxu0 0.0
        %1285 = vmatpush1.msra.mxu0 %v524
        %1286 = vmatprep.subr.mxu0 0.0
        %1287 = vmatpush1.msra.mxu0 %v523
        %1288 = vmatprep.subr.mxu0 0.0
        %1289 = vmatpush1.msra.mxu0 %v522
        %1290 = vmatprep.subr.mxu0 0.0
        %1291 = vmatpush1.msra.mxu0 %v521
        %1292 = vmatprep.subr.mxu0 0.0
        %1293 = vmatpush1.msra.mxu0 %v520
        %1294 = vmatprep.subr.mxu0 0.0
        %1295 = vmatpush1.msra.mxu0 %v519
        %1296 = vmatprep.subr.mxu0 0.0
        %1297 = vmatpush1.msra.mxu0 %v518
        %1298 = vmatprep.subr.mxu0 0.0
        %1299 = vmatpush1.msra.mxu0 %v517
        %1300 = vmatprep.subr.mxu0 0.0
        %1301 = vmatpush1.msra.mxu0 %v516
        %1302 = vmatprep.subr.mxu0 0.0
        %1303 = vmatpush2.msra.mxu0 0.0
        %1304 = vmatprep.subr.mxu0 0.0
        %1305 = vmatpush2.msra.mxu0 0.0
        %1306 = vmatprep.subr.mxu0 0.0
        %1307 = vmatpush2.msra.mxu0 0.0
        %1308 = vmatprep.subr.mxu0 0.0
        %1309 = vmatpush2.msra.mxu0 0.0
        %1310 = vmatprep.subr.mxu0 0.0
        %1311 = vmatpush2.msra.mxu0 0.0
        %1312 = vmatprep.subr.mxu0 0.0
        %1313 = vmatpush2.msra.mxu0 0.0
        %1314 = vmatprep.subr.mxu0 0.0
        %1315 = vmatpush2.msra.mxu0 0.0
        %1316 = vmatprep.subr.mxu0 0.0
        %1317 = vmatpush2.msra.mxu0 0.0
        %1318 = vmatprep.subr.mxu0 0.0
        %1319 = vmatpush2.msra.mxu0 0.0
        %1320 = vmatprep.subr.mxu0 0.0
        %1321 = vmatpush2.msra.mxu0 0.0
        %1322 = vmatprep.subr.mxu0 0.0
        %1323 = vmatpush2.msra.mxu0 0.0
        %1324 = vmatprep.subr.mxu0 0.0
        %1325 = vmatpush2.msra.mxu0 0.0
        %1326 = vmatprep.subr.mxu0 0.0
        %1327 = vmatpush2.msra.mxu0 0.0
        %1328 = vmatprep.subr.mxu0 0.0
        %1329 = vmatpush2.msra.mxu0 0.0
        %1330 = vmatprep.subr.mxu0 0.0
        %1331 = vmatpush2.msra.mxu0 0.0
        %1332 = vmatprep.subr.mxu0 0.0
        %1333 = vmatpush2.msra.mxu0 0.0
        %1334 = vmatprep.mubr.f32.mxu0 0.0
        %1335 = vmatmul.mubr.f32.gmra.mxu0 %v1254
        %v1336 = vpop.f32.mrf.mxu0
        %v1337 = vadd.f32 %v983, %v1336
        %v1338 = vpop.f32.mrf.mxu0
        %1339 = vmatprep.mubr.f32.mxu0 0.0
        %1340 = vmatmul.mubr.f32.gmra.mxu0 %v1255
        %v1341 = vpop.f32.mrf.mxu0
        %v1342 = vadd.f32 %v988, %v1341
        %v1343 = vpop.f32.mrf.mxu0
        %1344 = vmatprep.mubr.f32.mxu0 0.0
        %1345 = vmatmul.mubr.f32.gmra.mxu0 %v1256
        %v1346 = vpop.f32.mrf.mxu0
        %v1347 = vadd.f32 %v993, %v1346
        %v1348 = vpop.f32.mrf.mxu0
        %1349 = vmatprep.mubr.f32.mxu0 0.0
        %1350 = vmatmul.mubr.f32.gmra.mxu0 %v1257
        %v1351 = vpop.f32.mrf.mxu0
        %v1352 = vadd.f32 %v998, %v1351
        %v1353 = vpop.f32.mrf.mxu0
        %1354 = vmatprep.mubr.f32.mxu0 0.0
        %1355 = vmatmul.mubr.f32.gmra.mxu0 %v1258
        %v1356 = vpop.f32.mrf.mxu0
        %v1357 = vadd.f32 %v1003, %v1356
        %v1358 = vpop.f32.mrf.mxu0
        %1359 = vmatprep.mubr.f32.mxu0 0.0
        %1360 = vmatmul.mubr.f32.gmra.mxu0 %v1259
        %v1361 = vpop.f32.mrf.mxu0
        %v1362 = vadd.f32 %v1008, %v1361
        %v1363 = vpop.f32.mrf.mxu0
        %1364 = vmatprep.mubr.f32.mxu0 0.0
        %1365 = vmatmul.mubr.f32.gmra.mxu0 %v1260
        %v1366 = vpop.f32.mrf.mxu0
        %v1367 = vadd.f32 %v1013, %v1366
        %v1368 = vpop.f32.mrf.mxu0
        %1369 = vmatprep.mubr.f32.mxu0 0.0
        %1370 = vmatmul.mubr.f32.gmra.mxu0 %v1261
        %v1371 = vpop.f32.mrf.mxu0
        %v1372 = vadd.f32 %v1018, %v1371
        %v1373 = vpop.f32.mrf.mxu0
        %1374 = vmatprep.mubr.f32.mxu0 0.0
        %1375 = vmatmul.mubr.f32.gmra.mxu0 %v1262
        %v1376 = vpop.f32.mrf.mxu0
        %v1377 = vadd.f32 %v1023, %v1376
        %v1378 = vpop.f32.mrf.mxu0
        %1379 = vmatprep.mubr.f32.mxu0 0.0
        %1380 = vmatmul.mubr.f32.gmra.mxu0 %v1263
        %v1381 = vpop.f32.mrf.mxu0
        %v1382 = vadd.f32 %v1028, %v1381
        %v1383 = vpop.f32.mrf.mxu0
        %1384 = vmatprep.mubr.f32.mxu0 0.0
        %1385 = vmatmul.mubr.f32.gmra.mxu0 %v1264
        %v1386 = vpop.f32.mrf.mxu0
        %v1387 = vadd.f32 %v1033, %v1386
        %v1388 = vpop.f32.mrf.mxu0
        %1389 = vmatprep.mubr.f32.mxu0 0.0
        %1390 = vmatmul.mubr.f32.gmra.mxu0 %v1265
        %v1391 = vpop.f32.mrf.mxu0
        %v1392 = vadd.f32 %v1038, %v1391
        %v1393 = vpop.f32.mrf.mxu0
        %1394 = vmatprep.mubr.f32.mxu0 0.0
        %1395 = vmatmul.mubr.f32.gmra.mxu0 %v1266
        %v1396 = vpop.f32.mrf.mxu0
        %v1397 = vadd.f32 %v1043, %v1396
        %v1398 = vpop.f32.mrf.mxu0
        %1399 = vmatprep.mubr.f32.mxu0 0.0
        %1400 = vmatmul.mubr.f32.gmra.mxu0 %v1267
        %v1401 = vpop.f32.mrf.mxu0
        %v1402 = vadd.f32 %v1048, %v1401
        %v1403 = vpop.f32.mrf.mxu0
        %1404 = vmatprep.mubr.f32.mxu0 0.0
        %1405 = vmatmul.mubr.f32.gmra.mxu0 %v1268
        %v1406 = vpop.f32.mrf.mxu0
        %v1407 = vadd.f32 %v1053, %v1406
        %v1408 = vpop.f32.mrf.mxu0
        %1409 = vmatprep.mubr.f32.mxu0 0.0
        %1410 = vmatmul.mubr.f32.gmra.mxu0 %v1269
        %v1411 = vpop.f32.mrf.mxu0
        %v1412 = vadd.f32 %v1058, %v1411
        %v1413 = vpop.f32.mrf.mxu0
        %1414 = vdwg.mxu0
        %vm1415 = vcmp.gt.f32.partialorder %v1337, 0.0
        %vm1416 = vcmp.gt.f32.partialorder %v1342, 0.0
        %vm1417 = vcmp.gt.f32.partialorder %v1347, 0.0
        %vm1418 = vcmp.gt.f32.partialorder %v1352, 0.0
        %vm1419 = vcmp.gt.f32.partialorder %v1357, 0.0
        %vm1420 = vcmp.gt.f32.partialorder %v1362, 0.0
        %vm1421 = vcmp.gt.f32.partialorder %v1367, 0.0
        %vm1422 = vcmp.gt.f32.partialorder %v1372, 0.0
        %vm1423 = vcmp.gt.f32.partialorder %v1377, 0.0
        %vm1424 = vcmp.gt.f32.partialorder %v1382, 0.0
        %vm1425 = vcmp.gt.f32.partialorder %v1387, 0.0
        %vm1426 = vcmp.gt.f32.partialorder %v1392, 0.0
        %vm1427 = vcmp.gt.f32.partialorder %v1397, 0.0
        %vm1428 = vcmp.gt.f32.partialorder %v1402, 0.0
        %vm1429 = vcmp.gt.f32.partialorder %v1407, 0.0
        %vm1430 = vcmp.gt.f32.partialorder %v1412, 0.0
        %v1431 = vmul.f32 %v1337, 0.2
        %v1432 = vmul.f32 %v1342, 0.2
        %v1433 = vmul.f32 %v1347, 0.2
        %v1434 = vmul.f32 %v1352, 0.2
        %v1435 = vmul.f32 %v1357, 0.2
        %v1436 = vmul.f32 %v1362, 0.2
        %v1437 = vmul.f32 %v1367, 0.2
        %v1438 = vmul.f32 %v1372, 0.2
        %v1439 = vmul.f32 %v1377, 0.2
        %v1440 = vmul.f32 %v1382, 0.2
        %v1441 = vmul.f32 %v1387, 0.2
        %v1442 = vmul.f32 %v1392, 0.2
        %v1443 = vmul.f32 %v1397, 0.2
        %v1444 = vmul.f32 %v1402, 0.2
        %v1445 = vmul.f32 %v1407, 0.2
        %v1446 = vmul.f32 %v1412, 0.2
        %v1447 = vsel %vm1415, %v1337, %v1431
        %v1448 = vsel %vm1416, %v1342, %v1432
        %v1449 = vsel %vm1417, %v1347, %v1433
        %v1450 = vsel %vm1418, %v1352, %v1434
        %v1451 = vsel %vm1419, %v1357, %v1435
        %v1452 = vsel %vm1420, %v1362, %v1436
        %v1453 = vsel %vm1421, %v1367, %v1437
        %v1454 = vsel %vm1422, %v1372, %v1438
        %v1455 = vsel %vm1423, %v1377, %v1439
        %v1456 = vsel %vm1424, %v1382, %v1440
        %v1457 = vsel %vm1425, %v1387, %v1441
        %v1458 = vsel %vm1426, %v1392, %v1442
        %v1459 = vsel %vm1427, %v1397, %v1443
        %v1460 = vsel %vm1428, %v1402, %v1444
        %v1461 = vsel %vm1429, %v1407, %v1445
        %v1462 = vsel %vm1430, %v1412, %v1446
        %vm1463 = vcmp.gt.f32.partialorder %v473, 0.0
        %vm1464 = vcmp.gt.f32.partialorder %v474, 0.0
        %vm1465 = vcmp.gt.f32.partialorder %v475, 0.0
        %vm1466 = vcmp.gt.f32.partialorder %v476, 0.0
        %v1467 = vsel %vm1463, %v1447, -1e+30
        %v1468 = vsel %vm1464, %v1448, -1e+30
        %v1469 = vsel %vm1465, %v1449, -1e+30
        %v1470 = vsel %vm1466, %v1450, -1e+30
        %v1471 = vsel %vm1463, %v1451, -1e+30
        %v1472 = vsel %vm1464, %v1452, -1e+30
        %v1473 = vsel %vm1465, %v1453, -1e+30
        %v1474 = vsel %vm1466, %v1454, -1e+30
        %v1475 = vsel %vm1463, %v1455, -1e+30
        %v1476 = vsel %vm1464, %v1456, -1e+30
        %v1477 = vsel %vm1465, %v1457, -1e+30
        %v1478 = vsel %vm1466, %v1458, -1e+30
        %v1479 = vsel %vm1463, %v1459, -1e+30
        %v1480 = vsel %vm1464, %v1460, -1e+30
        %v1481 = vsel %vm1465, %v1461, -1e+30
        %v1482 = vsel %vm1466, %v1462, -1e+30
        %1483 = vmax.xlane.f32.xlu0 %v1467
        %v1484 = vpop.xlane.xlu0 %1483
        %1485 = vmax.xlane.f32.xlu0 %v1468
        %v1486 = vpop.xlane.xlu0 %1485
        %1487 = vmax.xlane.f32.xlu0 %v1469
        %v1488 = vpop.xlane.xlu0 %1487
        %1489 = vmax.xlane.f32.xlu0 %v1470
        %v1490 = vpop.xlane.xlu0 %1489
        %1491 = vmax.xlane.f32.xlu0 %v1471
        %v1492 = vpop.xlane.xlu0 %1491
        %1493 = vmax.xlane.f32.xlu0 %v1472
        %v1494 = vpop.xlane.xlu0 %1493
        %1495 = vmax.xlane.f32.xlu0 %v1473
        %v1496 = vpop.xlane.xlu0 %1495
        %1497 = vmax.xlane.f32.xlu0 %v1474
        %v1498 = vpop.xlane.xlu0 %1497
        %1499 = vmax.xlane.f32.xlu0 %v1475
        %v1500 = vpop.xlane.xlu0 %1499
        %1501 = vmax.xlane.f32.xlu0 %v1476
        %v1502 = vpop.xlane.xlu0 %1501
        %1503 = vmax.xlane.f32.xlu0 %v1477
        %v1504 = vpop.xlane.xlu0 %1503
        %1505 = vmax.xlane.f32.xlu0 %v1478
        %v1506 = vpop.xlane.xlu0 %1505
        %1507 = vmax.xlane.f32.xlu0 %v1479
        %v1508 = vpop.xlane.xlu0 %1507
        %1509 = vmax.xlane.f32.xlu0 %v1480
        %v1510 = vpop.xlane.xlu0 %1509
        %1511 = vmax.xlane.f32.xlu0 %v1481
        %v1512 = vpop.xlane.xlu0 %1511
        %1513 = vmax.xlane.f32.xlu0 %v1482
        %v1514 = vpop.xlane.xlu0 %1513
        %v1515 = vsub.f32 %v1467, %v1484
        %v1516 = vsub.f32 %v1468, %v1486
        %v1517 = vsub.f32 %v1469, %v1488
        %v1518 = vsub.f32 %v1470, %v1490
        %v1519 = vsub.f32 %v1471, %v1492
        %v1520 = vsub.f32 %v1472, %v1494
        %v1521 = vsub.f32 %v1473, %v1496
        %v1522 = vsub.f32 %v1474, %v1498
        %v1523 = vsub.f32 %v1475, %v1500
        %v1524 = vsub.f32 %v1476, %v1502
        %v1525 = vsub.f32 %v1477, %v1504
        %v1526 = vsub.f32 %v1478, %v1506
        %v1527 = vsub.f32 %v1479, %v1508
        %v1528 = vsub.f32 %v1480, %v1510
        %v1529 = vsub.f32 %v1481, %v1512
        %v1530 = vsub.f32 %v1482, %v1514
        %v1531 = vmul.f32 %v1515, 1.442695
        %v1532 = vpow.pop %v1531
        %v1533 = vmul.f32 %v1516, 1.442695
        %v1534 = vpow.pop %v1533
        %v1535 = vmul.f32 %v1517, 1.442695
        %v1536 = vpow.pop %v1535
        %v1537 = vmul.f32 %v1518, 1.442695
        %v1538 = vpow.pop %v1537
        %v1539 = vmul.f32 %v1519, 1.442695
        %v1540 = vpow.pop %v1539
        %v1541 = vmul.f32 %v1520, 1.442695
        %v1542 = vpow.pop %v1541
        %v1543 = vmul.f32 %v1521, 1.442695
        %v1544 = vpow.pop %v1543
        %v1545 = vmul.f32 %v1522, 1.442695
        %v1546 = vpow.pop %v1545
        %v1547 = vmul.f32 %v1523, 1.442695
        %v1548 = vpow.pop %v1547
        %v1549 = vmul.f32 %v1524, 1.442695
        %v1550 = vpow.pop %v1549
        %v1551 = vmul.f32 %v1525, 1.442695
        %v1552 = vpow.pop %v1551
        %v1553 = vmul.f32 %v1526, 1.442695
        %v1554 = vpow.pop %v1553
        %v1555 = vmul.f32 %v1527, 1.442695
        %v1556 = vpow.pop %v1555
        %v1557 = vmul.f32 %v1528, 1.442695
        %v1558 = vpow.pop %v1557
        %v1559 = vmul.f32 %v1529, 1.442695
        %v1560 = vpow.pop %v1559
        %v1561 = vmul.f32 %v1530, 1.442695
        %v1562 = vpow.pop %v1561
        %1563 = vmatprep.subr.mxu0 0.0
        %1564 = vmatpush1.msra.mxu0 %v531
        %1565 = vmatprep.subr.mxu0 0.0
        %1566 = vmatpush1.msra.mxu0 %v530
        %1567 = vmatprep.subr.mxu0 0.0
        %1568 = vmatpush1.msra.mxu0 %v529
        %1569 = vmatprep.subr.mxu0 0.0
        %1570 = vmatpush1.msra.mxu0 %v528
        %1571 = vmatprep.subr.mxu0 0.0
        %1572 = vmatpush1.msra.mxu0 %v527
        %1573 = vmatprep.subr.mxu0 0.0
        %1574 = vmatpush1.msra.mxu0 %v526
        %1575 = vmatprep.subr.mxu0 0.0
        %1576 = vmatpush1.msra.mxu0 %v525
        %1577 = vmatprep.subr.mxu0 0.0
        %1578 = vmatpush1.msra.mxu0 %v524
        %1579 = vmatprep.subr.mxu0 0.0
        %1580 = vmatpush1.msra.mxu0 %v523
        %1581 = vmatprep.subr.mxu0 0.0
        %1582 = vmatpush1.msra.mxu0 %v522
        %1583 = vmatprep.subr.mxu0 0.0
        %1584 = vmatpush1.msra.mxu0 %v521
        %1585 = vmatprep.subr.mxu0 0.0
        %1586 = vmatpush1.msra.mxu0 %v520
        %1587 = vmatprep.subr.mxu0 0.0
        %1588 = vmatpush1.msra.mxu0 %v519
        %1589 = vmatprep.subr.mxu0 0.0
        %1590 = vmatpush1.msra.mxu0 %v518
        %1591 = vmatprep.subr.mxu0 0.0
        %1592 = vmatpush1.msra.mxu0 %v517
        %1593 = vmatprep.subr.mxu0 0.0
        %1594 = vmatpush1.msra.mxu0 %v516
        %1595 = vmatprep.subr.mxu0 0.0
        %1596 = vmatpush2.msra.mxu0 0.0
        %1597 = vmatprep.subr.mxu0 0.0
        %1598 = vmatpush2.msra.mxu0 0.0
        %1599 = vmatprep.subr.mxu0 0.0
        %1600 = vmatpush2.msra.mxu0 0.0
        %1601 = vmatprep.subr.mxu0 0.0
        %1602 = vmatpush2.msra.mxu0 0.0
        %1603 = vmatprep.subr.mxu0 0.0
        %1604 = vmatpush2.msra.mxu0 0.0
        %1605 = vmatprep.subr.mxu0 0.0
        %1606 = vmatpush2.msra.mxu0 0.0
        %1607 = vmatprep.subr.mxu0 0.0
        %1608 = vmatpush2.msra.mxu0 0.0
        %1609 = vmatprep.subr.mxu0 0.0
        %1610 = vmatpush2.msra.mxu0 0.0
        %1611 = vmatprep.subr.mxu0 0.0
        %1612 = vmatpush2.msra.mxu0 0.0
        %1613 = vmatprep.subr.mxu0 0.0
        %1614 = vmatpush2.msra.mxu0 0.0
        %1615 = vmatprep.subr.mxu0 0.0
        %1616 = vmatpush2.msra.mxu0 0.0
        %1617 = vmatprep.subr.mxu0 0.0
        %1618 = vmatpush2.msra.mxu0 0.0
        %1619 = vmatprep.subr.mxu0 0.0
        %1620 = vmatpush2.msra.mxu0 0.0
        %1621 = vmatprep.subr.mxu0 0.0
        %1622 = vmatpush2.msra.mxu0 0.0
        %1623 = vmatprep.subr.mxu0 0.0
        %1624 = vmatpush2.msra.mxu0 0.0
        %1625 = vmatprep.subr.mxu0 0.0
        %1626 = vmatpush2.msra.mxu0 0.0
        %1627 = vmatprep.mubr.f32.mxu0 0.0
        %1628 = vmatmul.mubr.f32.gmra.mxu0 %v1532
        %v1629 = vpop.f32.mrf.mxu0
        %v1630 = vadd.f32 0.0, %v1629
        %v1631 = vpop.f32.mrf.mxu0
        %1632 = vmatprep.mubr.f32.mxu0 0.0
        %1633 = vmatmul.mubr.f32.gmra.mxu0 %v1534
        %v1634 = vpop.f32.mrf.mxu0
        %v1635 = vadd.f32 0.0, %v1634
        %v1636 = vpop.f32.mrf.mxu0
        %1637 = vmatprep.mubr.f32.mxu0 0.0
        %1638 = vmatmul.mubr.f32.gmra.mxu0 %v1536
        %v1639 = vpop.f32.mrf.mxu0
        %v1640 = vadd.f32 0.0, %v1639
        %v1641 = vpop.f32.mrf.mxu0
        %1642 = vmatprep.mubr.f32.mxu0 0.0
        %1643 = vmatmul.mubr.f32.gmra.mxu0 %v1538
        %v1644 = vpop.f32.mrf.mxu0
        %v1645 = vadd.f32 0.0, %v1644
        %v1646 = vpop.f32.mrf.mxu0
        %1647 = vmatprep.mubr.f32.mxu0 0.0
        %1648 = vmatmul.mubr.f32.gmra.mxu0 %v1540
        %v1649 = vpop.f32.mrf.mxu0
        %v1650 = vadd.f32 0.0, %v1649
        %v1651 = vpop.f32.mrf.mxu0
        %1652 = vmatprep.mubr.f32.mxu0 0.0
        %1653 = vmatmul.mubr.f32.gmra.mxu0 %v1542
        %v1654 = vpop.f32.mrf.mxu0
        %v1655 = vadd.f32 0.0, %v1654
        %v1656 = vpop.f32.mrf.mxu0
        %1657 = vmatprep.mubr.f32.mxu0 0.0
        %1658 = vmatmul.mubr.f32.gmra.mxu0 %v1544
        %v1659 = vpop.f32.mrf.mxu0
        %v1660 = vadd.f32 0.0, %v1659
        %v1661 = vpop.f32.mrf.mxu0
        %1662 = vmatprep.mubr.f32.mxu0 0.0
        %1663 = vmatmul.mubr.f32.gmra.mxu0 %v1546
        %v1664 = vpop.f32.mrf.mxu0
        %v1665 = vadd.f32 0.0, %v1664
        %v1666 = vpop.f32.mrf.mxu0
        %1667 = vmatprep.mubr.f32.mxu0 0.0
        %1668 = vmatmul.mubr.f32.gmra.mxu0 %v1548
        %v1669 = vpop.f32.mrf.mxu0
        %v1670 = vadd.f32 0.0, %v1669
        %v1671 = vpop.f32.mrf.mxu0
        %1672 = vmatprep.mubr.f32.mxu0 0.0
        %1673 = vmatmul.mubr.f32.gmra.mxu0 %v1550
        %v1674 = vpop.f32.mrf.mxu0
        %v1675 = vadd.f32 0.0, %v1674
        %v1676 = vpop.f32.mrf.mxu0
        %1677 = vmatprep.mubr.f32.mxu0 0.0
        %1678 = vmatmul.mubr.f32.gmra.mxu0 %v1552
        %v1679 = vpop.f32.mrf.mxu0
        %v1680 = vadd.f32 0.0, %v1679
        %v1681 = vpop.f32.mrf.mxu0
        %1682 = vmatprep.mubr.f32.mxu0 0.0
        %1683 = vmatmul.mubr.f32.gmra.mxu0 %v1554
        %v1684 = vpop.f32.mrf.mxu0
        %v1685 = vadd.f32 0.0, %v1684
        %v1686 = vpop.f32.mrf.mxu0
        %1687 = vmatprep.mubr.f32.mxu0 0.0
        %1688 = vmatmul.mubr.f32.gmra.mxu0 %v1556
        %v1689 = vpop.f32.mrf.mxu0
        %v1690 = vadd.f32 0.0, %v1689
        %v1691 = vpop.f32.mrf.mxu0
        %1692 = vmatprep.mubr.f32.mxu0 0.0
        %1693 = vmatmul.mubr.f32.gmra.mxu0 %v1558
        %v1694 = vpop.f32.mrf.mxu0
        %v1695 = vadd.f32 0.0, %v1694
        %v1696 = vpop.f32.mrf.mxu0
        %1697 = vmatprep.mubr.f32.mxu0 0.0
        %1698 = vmatmul.mubr.f32.gmra.mxu0 %v1560
        %v1699 = vpop.f32.mrf.mxu0
        %v1700 = vadd.f32 0.0, %v1699
        %v1701 = vpop.f32.mrf.mxu0
        %1702 = vmatprep.mubr.f32.mxu0 0.0
        %1703 = vmatmul.mubr.f32.gmra.mxu0 %v1562
        %v1704 = vpop.f32.mrf.mxu0
        %v1705 = vadd.f32 0.0, %v1704
        %v1706 = vpop.f32.mrf.mxu0
        %1707 = vdwg.mxu0
        %v1709 = vsel %vm867, %v789, 0
        %v1712 = vsel %vm867, %v794, 0
        %v1715 = vsel %vm867, %v799, 0
        %v1718 = vsel %vm867, %v804, 0
        %v1721 = vsel %vm867, %v809, 0
        %v1724 = vsel %vm867, %v814, 0
        %v1727 = vsel %vm867, %v819, 0
        %v1730 = vsel %vm867, %v824, 0
        %v1733 = vsel %vm867, %v829, 0
        %v1736 = vsel %vm867, %v834, 0
        %v1739 = vsel %vm867, %v839, 0
        %v1742 = vsel %vm867, %v844, 0
        %v1745 = vsel %vm867, %v849, 0
        %v1748 = vsel %vm867, %v854, 0
        %v1751 = vsel %vm867, %v859, 0
        %v1754 = vsel %vm867, %v864, 0
        %1756 = vmatprep.subr.mxu0 0.0
        %1757 = vmatpush1.msra.mxu0 0.0
        %1758 = vmatprep.subr.mxu0 0.0
        %1759 = vmatpush1.msra.mxu0 0.0
        %1760 = vmatprep.subr.mxu0 0.0
        %1761 = vmatpush1.msra.mxu0 0.0
        %1762 = vmatprep.subr.mxu0 0.0
        %1763 = vmatpush1.msra.mxu0 0.0
        %1764 = vmatprep.subr.mxu0 0.0
        %1765 = vmatpush1.msra.mxu0 0.0
        %1766 = vmatprep.subr.mxu0 0.0
        %1767 = vmatpush1.msra.mxu0 0.0
        %1768 = vmatprep.subr.mxu0 0.0
        %1769 = vmatpush1.msra.mxu0 0.0
        %1770 = vmatprep.subr.mxu0 0.0
        %1771 = vmatpush1.msra.mxu0 0.0
        %1772 = vmatprep.subr.mxu0 0.0
        %1773 = vmatpush1.msra.mxu0 0.0
        %1774 = vmatprep.subr.mxu0 0.0
        %1775 = vmatpush1.msra.mxu0 0.0
        %1776 = vmatprep.subr.mxu0 0.0
        %1777 = vmatpush1.msra.mxu0 0.0
        %1778 = vmatprep.subr.mxu0 0.0
        %1779 = vmatpush1.msra.mxu0 0.0
        %1780 = vmatprep.subr.mxu0 0.0
        %1781 = vmatpush1.msra.mxu0 %v574
        %1782 = vmatprep.subr.mxu0 0.0
        %1783 = vmatpush1.msra.mxu0 %v573
        %1784 = vmatprep.subr.mxu0 0.0
        %1785 = vmatpush1.msra.mxu0 %v572
        %1786 = vmatprep.subr.mxu0 0.0
        %1787 = vmatpush1.msra.mxu0 %v571
        %1788 = vmatprep.subr.mxu0 0.0
        %1789 = vmatpush2.msra.mxu0 0.0
        %1790 = vmatprep.subr.mxu0 0.0
        %1791 = vmatpush2.msra.mxu0 0.0
        %1792 = vmatprep.subr.mxu0 0.0
        %1793 = vmatpush2.msra.mxu0 0.0
        %1794 = vmatprep.subr.mxu0 0.0
        %1795 = vmatpush2.msra.mxu0 0.0
        %1796 = vmatprep.subr.mxu0 0.0
        %1797 = vmatpush2.msra.mxu0 0.0
        %1798 = vmatprep.subr.mxu0 0.0
        %1799 = vmatpush2.msra.mxu0 0.0
        %1800 = vmatprep.subr.mxu0 0.0
        %1801 = vmatpush2.msra.mxu0 0.0
        %1802 = vmatprep.subr.mxu0 0.0
        %1803 = vmatpush2.msra.mxu0 0.0
        %1804 = vmatprep.subr.mxu0 0.0
        %1805 = vmatpush2.msra.mxu0 0.0
        %1806 = vmatprep.subr.mxu0 0.0
        %1807 = vmatpush2.msra.mxu0 0.0
        %1808 = vmatprep.subr.mxu0 0.0
        %1809 = vmatpush2.msra.mxu0 0.0
        %1810 = vmatprep.subr.mxu0 0.0
        %1811 = vmatpush2.msra.mxu0 0.0
        %1812 = vmatprep.subr.mxu0 0.0
        %1813 = vmatpush2.msra.mxu0 0.0
        %1814 = vmatprep.subr.mxu0 0.0
        %1815 = vmatpush2.msra.mxu0 0.0
        %1816 = vmatprep.subr.mxu0 0.0
        %1817 = vmatpush2.msra.mxu0 0.0
        %1818 = vmatprep.subr.mxu0 0.0
        %1819 = vmatpush2.msra.mxu0 0.0
        %1820 = vmatprep.mubr.f32.mxu0 0.0
        %1821 = vmatmul.mubr.f32.gmra.mxu0 %v1709
        %v1822 = vpop.f32.mrf.mxu0
        %v1823 = vadd.f32 0.0, %v1822
        %v1824 = vpop.f32.mrf.mxu0
        %1825 = vmatprep.mubr.f32.mxu0 0.0
        %1826 = vmatmul.mubr.f32.gmra.mxu0 %v1712
        %v1827 = vpop.f32.mrf.mxu0
        %v1828 = vadd.f32 0.0, %v1827
        %v1829 = vpop.f32.mrf.mxu0
        %1830 = vmatprep.mubr.f32.mxu0 0.0
        %1831 = vmatmul.mubr.f32.gmra.mxu0 %v1715
        %v1832 = vpop.f32.mrf.mxu0
        %v1833 = vadd.f32 0.0, %v1832
        %v1834 = vpop.f32.mrf.mxu0
        %1835 = vmatprep.mubr.f32.mxu0 0.0
        %1836 = vmatmul.mubr.f32.gmra.mxu0 %v1718
        %v1837 = vpop.f32.mrf.mxu0
        %v1838 = vadd.f32 0.0, %v1837
        %v1839 = vpop.f32.mrf.mxu0
        %1840 = vmatprep.mubr.f32.mxu0 0.0
        %1841 = vmatmul.mubr.f32.gmra.mxu0 %v1721
        %v1842 = vpop.f32.mrf.mxu0
        %v1843 = vadd.f32 0.0, %v1842
        %v1844 = vpop.f32.mrf.mxu0
        %1845 = vmatprep.mubr.f32.mxu0 0.0
        %1846 = vmatmul.mubr.f32.gmra.mxu0 %v1724
        %v1847 = vpop.f32.mrf.mxu0
        %v1848 = vadd.f32 0.0, %v1847
        %v1849 = vpop.f32.mrf.mxu0
        %1850 = vmatprep.mubr.f32.mxu0 0.0
        %1851 = vmatmul.mubr.f32.gmra.mxu0 %v1727
        %v1852 = vpop.f32.mrf.mxu0
        %v1853 = vadd.f32 0.0, %v1852
        %v1854 = vpop.f32.mrf.mxu0
        %1855 = vmatprep.mubr.f32.mxu0 0.0
        %1856 = vmatmul.mubr.f32.gmra.mxu0 %v1730
        %v1857 = vpop.f32.mrf.mxu0
        %v1858 = vadd.f32 0.0, %v1857
        %v1859 = vpop.f32.mrf.mxu0
        %1860 = vmatprep.mubr.f32.mxu0 0.0
        %1861 = vmatmul.mubr.f32.gmra.mxu0 %v1733
        %v1862 = vpop.f32.mrf.mxu0
        %v1863 = vadd.f32 0.0, %v1862
        %v1864 = vpop.f32.mrf.mxu0
        %1865 = vmatprep.mubr.f32.mxu0 0.0
        %1866 = vmatmul.mubr.f32.gmra.mxu0 %v1736
        %v1867 = vpop.f32.mrf.mxu0
        %v1868 = vadd.f32 0.0, %v1867
        %v1869 = vpop.f32.mrf.mxu0
        %1870 = vmatprep.mubr.f32.mxu0 0.0
        %1871 = vmatmul.mubr.f32.gmra.mxu0 %v1739
        %v1872 = vpop.f32.mrf.mxu0
        %v1873 = vadd.f32 0.0, %v1872
        %v1874 = vpop.f32.mrf.mxu0
        %1875 = vmatprep.mubr.f32.mxu0 0.0
        %1876 = vmatmul.mubr.f32.gmra.mxu0 %v1742
        %v1877 = vpop.f32.mrf.mxu0
        %v1878 = vadd.f32 0.0, %v1877
        %v1879 = vpop.f32.mrf.mxu0
        %1880 = vmatprep.mubr.f32.mxu0 0.0
        %1881 = vmatmul.mubr.f32.gmra.mxu0 %v1745
        %v1882 = vpop.f32.mrf.mxu0
        %v1883 = vadd.f32 0.0, %v1882
        %v1884 = vpop.f32.mrf.mxu0
        %1885 = vmatprep.mubr.f32.mxu0 0.0
        %1886 = vmatmul.mubr.f32.gmra.mxu0 %v1748
        %v1887 = vpop.f32.mrf.mxu0
        %v1888 = vadd.f32 0.0, %v1887
        %v1889 = vpop.f32.mrf.mxu0
        %1890 = vmatprep.mubr.f32.mxu0 0.0
        %1891 = vmatmul.mubr.f32.gmra.mxu0 %v1751
        %v1892 = vpop.f32.mrf.mxu0
        %v1893 = vadd.f32 0.0, %v1892
        %v1894 = vpop.f32.mrf.mxu0
        %1895 = vmatprep.mubr.f32.mxu0 0.0
        %1896 = vmatmul.mubr.f32.gmra.mxu0 %v1754
        %v1897 = vpop.f32.mrf.mxu0
        %v1898 = vadd.f32 0.0, %v1897
        %v1899 = vpop.f32.mrf.mxu0
        %1900 = vdwg.mxu0
        %v1901 = vmul.f32 %v1823, %v516
        %v1902 = vmul.f32 %v1828, %v517
        %v1903 = vmul.f32 %v1833, %v518
        %v1904 = vmul.f32 %v1838, %v519
        %v1905 = vmul.f32 %v1843, %v520
        %v1906 = vmul.f32 %v1848, %v521
        %v1907 = vmul.f32 %v1853, %v522
        %v1908 = vmul.f32 %v1858, %v523
        %v1909 = vmul.f32 %v1863, %v524
        %v1910 = vmul.f32 %v1868, %v525
        %v1911 = vmul.f32 %v1873, %v526
        %v1912 = vmul.f32 %v1878, %v527
        %v1913 = vmul.f32 %v1883, %v528
        %v1914 = vmul.f32 %v1888, %v529
        %v1915 = vmul.f32 %v1893, %v530
        %v1916 = vmul.f32 %v1898, %v531
        %1917 = vmatprep.subr.mxu0 0.0
        %1918 = vmatpush1.msra.mxu0 %v1916
        %1919 = vmatprep.subr.mxu0 0.0
        %1920 = vmatpush1.msra.mxu0 %v1915
        %1921 = vmatprep.subr.mxu0 0.0
        %1922 = vmatpush1.msra.mxu0 %v1914
        %1923 = vmatprep.subr.mxu0 0.0
        %1924 = vmatpush1.msra.mxu0 %v1913
        %1925 = vmatprep.subr.mxu0 0.0
        %1926 = vmatpush1.msra.mxu0 %v1912
        %1927 = vmatprep.subr.mxu0 0.0
        %1928 = vmatpush1.msra.mxu0 %v1911
        %1929 = vmatprep.subr.mxu0 0.0
        %1930 = vmatpush1.msra.mxu0 %v1910
        %1931 = vmatprep.subr.mxu0 0.0
        %1932 = vmatpush1.msra.mxu0 %v1909
        %1933 = vmatprep.subr.mxu0 0.0
        %1934 = vmatpush1.msra.mxu0 %v1908
        %1935 = vmatprep.subr.mxu0 0.0
        %1936 = vmatpush1.msra.mxu0 %v1907
        %1937 = vmatprep.subr.mxu0 0.0
        %1938 = vmatpush1.msra.mxu0 %v1906
        %1939 = vmatprep.subr.mxu0 0.0
        %1940 = vmatpush1.msra.mxu0 %v1905
        %1941 = vmatprep.subr.mxu0 0.0
        %1942 = vmatpush1.msra.mxu0 %v1904
        %1943 = vmatprep.subr.mxu0 0.0
        %1944 = vmatpush1.msra.mxu0 %v1903
        %1945 = vmatprep.subr.mxu0 0.0
        %1946 = vmatpush1.msra.mxu0 %v1902
        %1947 = vmatprep.subr.mxu0 0.0
        %1948 = vmatpush1.msra.mxu0 %v1901
        %1949 = vmatprep.subr.mxu0 0.0
        %1950 = vmatpush2.msra.mxu0 0.0
        %1951 = vmatprep.subr.mxu0 0.0
        %1952 = vmatpush2.msra.mxu0 0.0
        %1953 = vmatprep.subr.mxu0 0.0
        %1954 = vmatpush2.msra.mxu0 0.0
        %1955 = vmatprep.subr.mxu0 0.0
        %1956 = vmatpush2.msra.mxu0 0.0
        %1957 = vmatprep.subr.mxu0 0.0
        %1958 = vmatpush2.msra.mxu0 0.0
        %1959 = vmatprep.subr.mxu0 0.0
        %1960 = vmatpush2.msra.mxu0 0.0
        %1961 = vmatprep.subr.mxu0 0.0
        %1962 = vmatpush2.msra.mxu0 0.0
        %1963 = vmatprep.subr.mxu0 0.0
        %1964 = vmatpush2.msra.mxu0 0.0
        %1965 = vmatprep.subr.mxu0 0.0
        %1966 = vmatpush2.msra.mxu0 0.0
        %1967 = vmatprep.subr.mxu0 0.0
        %1968 = vmatpush2.msra.mxu0 0.0
        %1969 = vmatprep.subr.mxu0 0.0
        %1970 = vmatpush2.msra.mxu0 0.0
        %1971 = vmatprep.subr.mxu0 0.0
        %1972 = vmatpush2.msra.mxu0 0.0
        %1973 = vmatprep.subr.mxu0 0.0
        %1974 = vmatpush2.msra.mxu0 0.0
        %1975 = vmatprep.subr.mxu0 0.0
        %1976 = vmatpush2.msra.mxu0 0.0
        %1977 = vmatprep.subr.mxu0 0.0
        %1978 = vmatpush2.msra.mxu0 0.0
        %1979 = vmatprep.subr.mxu0 0.0
        %1980 = vmatpush2.msra.mxu0 0.0
        %1981 = vmatprep.mubr.f32.mxu0 0.0
        %1982 = vmatmul.mubr.f32.gmra.mxu0 %v1532
        %v1983 = vpop.f32.mrf.mxu0
        %v1984 = vadd.f32 0.0, %v1983
        %v1985 = vpop.f32.mrf.mxu0
        %1986 = vmatprep.mubr.f32.mxu0 0.0
        %1987 = vmatmul.mubr.f32.gmra.mxu0 %v1534
        %v1988 = vpop.f32.mrf.mxu0
        %v1989 = vadd.f32 0.0, %v1988
        %v1990 = vpop.f32.mrf.mxu0
        %1991 = vmatprep.mubr.f32.mxu0 0.0
        %1992 = vmatmul.mubr.f32.gmra.mxu0 %v1536
        %v1993 = vpop.f32.mrf.mxu0
        %v1994 = vadd.f32 0.0, %v1993
        %v1995 = vpop.f32.mrf.mxu0
        %1996 = vmatprep.mubr.f32.mxu0 0.0
        %1997 = vmatmul.mubr.f32.gmra.mxu0 %v1538
        %v1998 = vpop.f32.mrf.mxu0
        %v1999 = vadd.f32 0.0, %v1998
        %v2000 = vpop.f32.mrf.mxu0
        %2001 = vmatprep.mubr.f32.mxu0 0.0
        %2002 = vmatmul.mubr.f32.gmra.mxu0 %v1540
        %v2003 = vpop.f32.mrf.mxu0
        %v2004 = vadd.f32 0.0, %v2003
        %v2005 = vpop.f32.mrf.mxu0
        %2006 = vmatprep.mubr.f32.mxu0 0.0
        %2007 = vmatmul.mubr.f32.gmra.mxu0 %v1542
        %v2008 = vpop.f32.mrf.mxu0
        %v2009 = vadd.f32 0.0, %v2008
        %v2010 = vpop.f32.mrf.mxu0
        %2011 = vmatprep.mubr.f32.mxu0 0.0
        %2012 = vmatmul.mubr.f32.gmra.mxu0 %v1544
        %v2013 = vpop.f32.mrf.mxu0
        %v2014 = vadd.f32 0.0, %v2013
        %v2015 = vpop.f32.mrf.mxu0
        %2016 = vmatprep.mubr.f32.mxu0 0.0
        %2017 = vmatmul.mubr.f32.gmra.mxu0 %v1546
        %v2018 = vpop.f32.mrf.mxu0
        %v2019 = vadd.f32 0.0, %v2018
        %v2020 = vpop.f32.mrf.mxu0
        %2021 = vmatprep.mubr.f32.mxu0 0.0
        %2022 = vmatmul.mubr.f32.gmra.mxu0 %v1548
        %v2023 = vpop.f32.mrf.mxu0
        %v2024 = vadd.f32 0.0, %v2023
        %v2025 = vpop.f32.mrf.mxu0
        %2026 = vmatprep.mubr.f32.mxu0 0.0
        %2027 = vmatmul.mubr.f32.gmra.mxu0 %v1550
        %v2028 = vpop.f32.mrf.mxu0
        %v2029 = vadd.f32 0.0, %v2028
        %v2030 = vpop.f32.mrf.mxu0
        %2031 = vmatprep.mubr.f32.mxu0 0.0
        %2032 = vmatmul.mubr.f32.gmra.mxu0 %v1552
        %v2033 = vpop.f32.mrf.mxu0
        %v2034 = vadd.f32 0.0, %v2033
        %v2035 = vpop.f32.mrf.mxu0
        %2036 = vmatprep.mubr.f32.mxu0 0.0
        %2037 = vmatmul.mubr.f32.gmra.mxu0 %v1554
        %v2038 = vpop.f32.mrf.mxu0
        %v2039 = vadd.f32 0.0, %v2038
        %v2040 = vpop.f32.mrf.mxu0
        %2041 = vmatprep.mubr.f32.mxu0 0.0
        %2042 = vmatmul.mubr.f32.gmra.mxu0 %v1556
        %v2043 = vpop.f32.mrf.mxu0
        %v2044 = vadd.f32 0.0, %v2043
        %v2045 = vpop.f32.mrf.mxu0
        %2046 = vmatprep.mubr.f32.mxu0 0.0
        %2047 = vmatmul.mubr.f32.gmra.mxu0 %v1558
        %v2048 = vpop.f32.mrf.mxu0
        %v2049 = vadd.f32 0.0, %v2048
        %v2050 = vpop.f32.mrf.mxu0
        %2051 = vmatprep.mubr.f32.mxu0 0.0
        %2052 = vmatmul.mubr.f32.gmra.mxu0 %v1560
        %v2053 = vpop.f32.mrf.mxu0
        %v2054 = vadd.f32 0.0, %v2053
        %v2055 = vpop.f32.mrf.mxu0
        %2056 = vmatprep.mubr.f32.mxu0 0.0
        %2057 = vmatmul.mubr.f32.gmra.mxu0 %v1562
        %v2058 = vpop.f32.mrf.mxu0
        %v2059 = vadd.f32 0.0, %v2058
        %v2060 = vpop.f32.mrf.mxu0
        %2061 = vdwg.mxu0
        %v2062 = vmul.f32 %v1984, %v550
        %v2063 = vmul.f32 %v1989, %v551
        %v2064 = vmul.f32 %v1994, %v552
        %v2065 = vmul.f32 %v1999, %v553
        %v2066 = vmul.f32 %v2004, %v554
        %v2067 = vmul.f32 %v2009, %v555
        %v2068 = vmul.f32 %v2014, %v556
        %v2069 = vmul.f32 %v2019, %v557
        %v2070 = vmul.f32 %v2024, %v558
        %v2071 = vmul.f32 %v2029, %v559
        %v2072 = vmul.f32 %v2034, %v560
        %v2073 = vmul.f32 %v2039, %v561
        %v2074 = vmul.f32 %v2044, %v562
        %v2075 = vmul.f32 %v2049, %v563
        %v2076 = vmul.f32 %v2054, %v564
        %v2077 = vmul.f32 %v2059, %v565
        %2078 = vmatprep.subr.mxu0 0.0
        %2079 = vmatpush1.msra.mxu0 %v2077
        %2080 = vmatprep.subr.mxu0 0.0
        %2081 = vmatpush1.msra.mxu0 %v2076
        %2082 = vmatprep.subr.mxu0 0.0
        %2083 = vmatpush1.msra.mxu0 %v2075
        %2084 = vmatprep.subr.mxu0 0.0
        %2085 = vmatpush1.msra.mxu0 %v2074
        %2086 = vmatprep.subr.mxu0 0.0
        %2087 = vmatpush1.msra.mxu0 %v2073
        %2088 = vmatprep.subr.mxu0 0.0
        %2089 = vmatpush1.msra.mxu0 %v2072
        %2090 = vmatprep.subr.mxu0 0.0
        %2091 = vmatpush1.msra.mxu0 %v2071
        %2092 = vmatprep.subr.mxu0 0.0
        %2093 = vmatpush1.msra.mxu0 %v2070
        %2094 = vmatprep.subr.mxu0 0.0
        %2095 = vmatpush1.msra.mxu0 %v2069
        %2096 = vmatprep.subr.mxu0 0.0
        %2097 = vmatpush1.msra.mxu0 %v2068
        %2098 = vmatprep.subr.mxu0 0.0
        %2099 = vmatpush1.msra.mxu0 %v2067
        %2100 = vmatprep.subr.mxu0 0.0
        %2101 = vmatpush1.msra.mxu0 %v2066
        %2102 = vmatprep.subr.mxu0 0.0
        %2103 = vmatpush1.msra.mxu0 %v2065
        %2104 = vmatprep.subr.mxu0 0.0
        %2105 = vmatpush1.msra.mxu0 %v2064
        %2106 = vmatprep.subr.mxu0 0.0
        %2107 = vmatpush1.msra.mxu0 %v2063
        %2108 = vmatprep.subr.mxu0 0.0
        %2109 = vmatpush1.msra.mxu0 %v2062
        %2110 = vmatprep.subr.mxu0 0.0
        %2111 = vmatpush2.msra.mxu0 0.0
        %2112 = vmatprep.subr.mxu0 0.0
        %2113 = vmatpush2.msra.mxu0 0.0
        %2114 = vmatprep.subr.mxu0 0.0
        %2115 = vmatpush2.msra.mxu0 0.0
        %2116 = vmatprep.subr.mxu0 0.0
        %2117 = vmatpush2.msra.mxu0 0.0
        %2118 = vmatprep.subr.mxu0 0.0
        %2119 = vmatpush2.msra.mxu0 0.0
        %2120 = vmatprep.subr.mxu0 0.0
        %2121 = vmatpush2.msra.mxu0 0.0
        %2122 = vmatprep.subr.mxu0 0.0
        %2123 = vmatpush2.msra.mxu0 0.0
        %2124 = vmatprep.subr.mxu0 0.0
        %2125 = vmatpush2.msra.mxu0 0.0
        %2126 = vmatprep.subr.mxu0 0.0
        %2127 = vmatpush2.msra.mxu0 0.0
        %2128 = vmatprep.subr.mxu0 0.0
        %2129 = vmatpush2.msra.mxu0 0.0
        %2130 = vmatprep.subr.mxu0 0.0
        %2131 = vmatpush2.msra.mxu0 0.0
        %2132 = vmatprep.subr.mxu0 0.0
        %2133 = vmatpush2.msra.mxu0 0.0
        %2134 = vmatprep.subr.mxu0 0.0
        %2135 = vmatpush2.msra.mxu0 0.0
        %2136 = vmatprep.subr.mxu0 0.0
        %2137 = vmatpush2.msra.mxu0 0.0
        %2138 = vmatprep.subr.mxu0 0.0
        %2139 = vmatpush2.msra.mxu0 0.0
        %2140 = vmatprep.subr.mxu0 0.0
        %2141 = vmatpush2.msra.mxu0 0.0
        %2142 = vmatprep.mubr.f32.mxu0 0.0
        %2143 = vmatmul.mubr.f32.gmra.mxu0 %v566
        %v2144 = vpop.f32.mrf.mxu0
        %v2145 = vadd.f32 0.0, %v2144
        %v2146 = vpop.f32.mrf.mxu0
        %2147 = vmatprep.mubr.f32.mxu0 0.0
        %2148 = vmatmul.mubr.f32.gmra.mxu0 %v567
        %v2149 = vpop.f32.mrf.mxu0
        %v2150 = vadd.f32 0.0, %v2149
        %v2151 = vpop.f32.mrf.mxu0
        %2152 = vmatprep.mubr.f32.mxu0 0.0
        %2153 = vmatmul.mubr.f32.gmra.mxu0 %v568
        %v2154 = vpop.f32.mrf.mxu0
        %v2155 = vadd.f32 0.0, %v2154
        %v2156 = vpop.f32.mrf.mxu0
        %2157 = vmatprep.mubr.f32.mxu0 0.0
        %2158 = vmatmul.mubr.f32.gmra.mxu0 %v569
        %v2159 = vpop.f32.mrf.mxu0
        %v2160 = vadd.f32 0.0, %v2159
        %v2161 = vpop.f32.mrf.mxu0
        %2162 = vdwg.mxu0
        %v2163 = vmul.f32 %v1630, %v550
        %v2164 = vmul.f32 %v1635, %v551
        %v2165 = vmul.f32 %v1640, %v552
        %v2166 = vmul.f32 %v1645, %v553
        %v2167 = vmul.f32 %v1650, %v554
        %v2168 = vmul.f32 %v1655, %v555
        %v2169 = vmul.f32 %v1660, %v556
        %v2170 = vmul.f32 %v1665, %v557
        %v2171 = vmul.f32 %v1670, %v558
        %v2172 = vmul.f32 %v1675, %v559
        %v2173 = vmul.f32 %v1680, %v560
        %v2174 = vmul.f32 %v1685, %v561
        %v2175 = vmul.f32 %v1690, %v562
        %v2176 = vmul.f32 %v1695, %v563
        %v2177 = vmul.f32 %v1700, %v564
        %v2178 = vmul.f32 %v1705, %v565
        %2179 = vmatprep.subr.mxu0 0.0
        %2180 = vmatpush1.msra.mxu0 %v2178
        %2181 = vmatprep.subr.mxu0 0.0
        %2182 = vmatpush1.msra.mxu0 %v2177
        %2183 = vmatprep.subr.mxu0 0.0
        %2184 = vmatpush1.msra.mxu0 %v2176
        %2185 = vmatprep.subr.mxu0 0.0
        %2186 = vmatpush1.msra.mxu0 %v2175
        %2187 = vmatprep.subr.mxu0 0.0
        %2188 = vmatpush1.msra.mxu0 %v2174
        %2189 = vmatprep.subr.mxu0 0.0
        %2190 = vmatpush1.msra.mxu0 %v2173
        %2191 = vmatprep.subr.mxu0 0.0
        %2192 = vmatpush1.msra.mxu0 %v2172
        %2193 = vmatprep.subr.mxu0 0.0
        %2194 = vmatpush1.msra.mxu0 %v2171
        %2195 = vmatprep.subr.mxu0 0.0
        %2196 = vmatpush1.msra.mxu0 %v2170
        %2197 = vmatprep.subr.mxu0 0.0
        %2198 = vmatpush1.msra.mxu0 %v2169
        %2199 = vmatprep.subr.mxu0 0.0
        %2200 = vmatpush1.msra.mxu0 %v2168
        %2201 = vmatprep.subr.mxu0 0.0
        %2202 = vmatpush1.msra.mxu0 %v2167
        %2203 = vmatprep.subr.mxu0 0.0
        %2204 = vmatpush1.msra.mxu0 %v2166
        %2205 = vmatprep.subr.mxu0 0.0
        %2206 = vmatpush1.msra.mxu0 %v2165
        %2207 = vmatprep.subr.mxu0 0.0
        %2208 = vmatpush1.msra.mxu0 %v2164
        %2209 = vmatprep.subr.mxu0 0.0
        %2210 = vmatpush1.msra.mxu0 %v2163
        %2211 = vmatprep.subr.mxu0 0.0
        %2212 = vmatpush2.msra.mxu0 0.0
        %2213 = vmatprep.subr.mxu0 0.0
        %2214 = vmatpush2.msra.mxu0 0.0
        %2215 = vmatprep.subr.mxu0 0.0
        %2216 = vmatpush2.msra.mxu0 0.0
        %2217 = vmatprep.subr.mxu0 0.0
        %2218 = vmatpush2.msra.mxu0 0.0
        %2219 = vmatprep.subr.mxu0 0.0
        %2220 = vmatpush2.msra.mxu0 0.0
        %2221 = vmatprep.subr.mxu0 0.0
        %2222 = vmatpush2.msra.mxu0 0.0
        %2223 = vmatprep.subr.mxu0 0.0
        %2224 = vmatpush2.msra.mxu0 0.0
        %2225 = vmatprep.subr.mxu0 0.0
        %2226 = vmatpush2.msra.mxu0 0.0
        %2227 = vmatprep.subr.mxu0 0.0
        %2228 = vmatpush2.msra.mxu0 0.0
        %2229 = vmatprep.subr.mxu0 0.0
        %2230 = vmatpush2.msra.mxu0 0.0
        %2231 = vmatprep.subr.mxu0 0.0
        %2232 = vmatpush2.msra.mxu0 0.0
        %2233 = vmatprep.subr.mxu0 0.0
        %2234 = vmatpush2.msra.mxu0 0.0
        %2235 = vmatprep.subr.mxu0 0.0
        %2236 = vmatpush2.msra.mxu0 0.0
        %2237 = vmatprep.subr.mxu0 0.0
        %2238 = vmatpush2.msra.mxu0 0.0
        %2239 = vmatprep.subr.mxu0 0.0
        %2240 = vmatpush2.msra.mxu0 0.0
        %2241 = vmatprep.subr.mxu0 0.0
        %2242 = vmatpush2.msra.mxu0 0.0
        %2243 = vmatprep.mubr.f32.mxu0 0.0
        %2244 = vmatmul.mubr.f32.gmra.mxu0 %v566
        %v2245 = vpop.f32.mrf.mxu0
        %v2246 = vadd.f32 0.0, %v2245
        %v2247 = vpop.f32.mrf.mxu0
        %2248 = vmatprep.mubr.f32.mxu0 0.0
        %2249 = vmatmul.mubr.f32.gmra.mxu0 %v567
        %v2250 = vpop.f32.mrf.mxu0
        %v2251 = vadd.f32 0.0, %v2250
        %v2252 = vpop.f32.mrf.mxu0
        %2253 = vmatprep.mubr.f32.mxu0 0.0
        %2254 = vmatmul.mubr.f32.gmra.mxu0 %v568
        %v2255 = vpop.f32.mrf.mxu0
        %v2256 = vadd.f32 0.0, %v2255
        %v2257 = vpop.f32.mrf.mxu0
        %2258 = vmatprep.mubr.f32.mxu0 0.0
        %2259 = vmatmul.mubr.f32.gmra.mxu0 %v569
        %v2260 = vpop.f32.mrf.mxu0
        %v2261 = vadd.f32 0.0, %v2260
        %v2262 = vpop.f32.mrf.mxu0
        %2263 = vdwg.mxu0
        %v2264 = vrcp.pop %v2246
        %v2265 = vmul.f32 %v2145, %v2264
        %v2266 = vrcp.pop %v2251
        %v2267 = vmul.f32 %v2150, %v2266
        %v2268 = vrcp.pop %v2256
        %v2269 = vmul.f32 %v2155, %v2268
        %v2270 = vrcp.pop %v2261
        %v2271 = vmul.f32 %v2160, %v2270
        %v2272 = vlaneseq
        %v2273 = vshrl.u32 %v2272, 7
        %v2274 = vsub.s32 0, %v2273
        %v2275 = vrot.slane %v575, %v2274
        %v2276 = vadd.f32 %v2265, %v2275
        %v2277 = vadd.f32 %v2267, %v2275
        %v2278 = vadd.f32 %v2269, %v2275
        %v2279 = vadd.f32 %v2271, %v2275
        %2280 = vmatprep.subr.mxu0 0.0
        %2281 = vmatpush1.msra.mxu0 %v531
        %2282 = vmatprep.subr.mxu0 0.0
        %2283 = vmatpush1.msra.mxu0 %v530
        %2284 = vmatprep.subr.mxu0 0.0
        %2285 = vmatpush1.msra.mxu0 %v529
        %2286 = vmatprep.subr.mxu0 0.0
        %2287 = vmatpush1.msra.mxu0 %v528
        %2288 = vmatprep.subr.mxu0 0.0
        %2289 = vmatpush1.msra.mxu0 %v527
        %2290 = vmatprep.subr.mxu0 0.0
        %2291 = vmatpush1.msra.mxu0 %v526
        %2292 = vmatprep.subr.mxu0 0.0
        %2293 = vmatpush1.msra.mxu0 %v525
        %2294 = vmatprep.subr.mxu0 0.0
        %2295 = vmatpush1.msra.mxu0 %v524
        %2296 = vmatprep.subr.mxu0 0.0
        %2297 = vmatpush1.msra.mxu0 %v523
        %2298 = vmatprep.subr.mxu0 0.0
        %2299 = vmatpush1.msra.mxu0 %v522
        %2300 = vmatprep.subr.mxu0 0.0
        %2301 = vmatpush1.msra.mxu0 %v521
        %2302 = vmatprep.subr.mxu0 0.0
        %2303 = vmatpush1.msra.mxu0 %v520
        %2304 = vmatprep.subr.mxu0 0.0
        %2305 = vmatpush1.msra.mxu0 %v519
        %2306 = vmatprep.subr.mxu0 0.0
        %2307 = vmatpush1.msra.mxu0 %v518
        %2308 = vmatprep.subr.mxu0 0.0
        %2309 = vmatpush1.msra.mxu0 %v517
        %2310 = vmatprep.subr.mxu0 0.0
        %2311 = vmatpush1.msra.mxu0 %v516
        %2312 = vmatprep.subr.mxu0 0.0
        %2313 = vmatpush2.msra.mxu0 0.0
        %2314 = vmatprep.subr.mxu0 0.0
        %2315 = vmatpush2.msra.mxu0 0.0
        %2316 = vmatprep.subr.mxu0 0.0
        %2317 = vmatpush2.msra.mxu0 0.0
        %2318 = vmatprep.subr.mxu0 0.0
        %2319 = vmatpush2.msra.mxu0 0.0
        %2320 = vmatprep.subr.mxu0 0.0
        %2321 = vmatpush2.msra.mxu0 0.0
        %2322 = vmatprep.subr.mxu0 0.0
        %2323 = vmatpush2.msra.mxu0 0.0
        %2324 = vmatprep.subr.mxu0 0.0
        %2325 = vmatpush2.msra.mxu0 0.0
        %2326 = vmatprep.subr.mxu0 0.0
        %2327 = vmatpush2.msra.mxu0 0.0
        %2328 = vmatprep.subr.mxu0 0.0
        %2329 = vmatpush2.msra.mxu0 0.0
        %2330 = vmatprep.subr.mxu0 0.0
        %2331 = vmatpush2.msra.mxu0 0.0
        %2332 = vmatprep.subr.mxu0 0.0
        %2333 = vmatpush2.msra.mxu0 0.0
        %2334 = vmatprep.subr.mxu0 0.0
        %2335 = vmatpush2.msra.mxu0 0.0
        %2336 = vmatprep.subr.mxu0 0.0
        %2337 = vmatpush2.msra.mxu0 0.0
        %2338 = vmatprep.subr.mxu0 0.0
        %2339 = vmatpush2.msra.mxu0 0.0
        %2340 = vmatprep.subr.mxu0 0.0
        %2341 = vmatpush2.msra.mxu0 0.0
        %2342 = vmatprep.subr.mxu0 0.0
        %2343 = vmatpush2.msra.mxu0 0.0
        %2344 = vmatprep.mubr.f32.mxu0 0.0
        %2345 = vmatmul.mubr.f32.gmra.mxu0 %v2276
        %v2346 = vpop.f32.mrf.mxu0
        %v2347 = vadd.f32 0.0, %v2346
        %v2348 = vpop.f32.mrf.mxu0
        %2349 = vmatprep.mubr.f32.mxu0 0.0
        %2350 = vmatmul.mubr.f32.gmra.mxu0 %v2277
        %v2351 = vpop.f32.mrf.mxu0
        %v2352 = vadd.f32 0.0, %v2351
        %v2353 = vpop.f32.mrf.mxu0
        %2354 = vmatprep.mubr.f32.mxu0 0.0
        %2355 = vmatmul.mubr.f32.gmra.mxu0 %v2278
        %v2356 = vpop.f32.mrf.mxu0
        %v2357 = vadd.f32 0.0, %v2356
        %v2358 = vpop.f32.mrf.mxu0
        %2359 = vmatprep.mubr.f32.mxu0 0.0
        %2360 = vmatmul.mubr.f32.gmra.mxu0 %v2279
        %v2361 = vpop.f32.mrf.mxu0
        %v2362 = vadd.f32 0.0, %v2361
        %v2363 = vpop.f32.mrf.mxu0
        %2364 = vdwg.mxu0
        %v2365 = vmul.f32 %v2347, 0.03125
        %v2366 = vmul.f32 %v2352, 0.03125
        %v2367 = vmul.f32 %v2357, 0.03125
        %v2368 = vmul.f32 %v2362, 0.03125
        %v2369 = vsub.f32 %v2276, %v2365
        %v2370 = vsub.f32 %v2277, %v2366
        %v2371 = vsub.f32 %v2278, %v2367
        %v2372 = vsub.f32 %v2279, %v2368
        %v2373 = vmul.f32 %v2369, %v2369
        %v2374 = vmul.f32 %v2370, %v2370
        %v2375 = vmul.f32 %v2371, %v2371
        %v2376 = vmul.f32 %v2372, %v2372
        %2377 = vmatprep.subr.mxu0 0.0
        %2378 = vmatpush1.msra.mxu0 %v531
        %2379 = vmatprep.subr.mxu0 0.0
        %2380 = vmatpush1.msra.mxu0 %v530
        %2381 = vmatprep.subr.mxu0 0.0
        %2382 = vmatpush1.msra.mxu0 %v529
        %2383 = vmatprep.subr.mxu0 0.0
        %2384 = vmatpush1.msra.mxu0 %v528
        %2385 = vmatprep.subr.mxu0 0.0
        %2386 = vmatpush1.msra.mxu0 %v527
        %2387 = vmatprep.subr.mxu0 0.0
        %2388 = vmatpush1.msra.mxu0 %v526
        %2389 = vmatprep.subr.mxu0 0.0
        %2390 = vmatpush1.msra.mxu0 %v525
        %2391 = vmatprep.subr.mxu0 0.0
        %2392 = vmatpush1.msra.mxu0 %v524
        %2393 = vmatprep.subr.mxu0 0.0
        %2394 = vmatpush1.msra.mxu0 %v523
        %2395 = vmatprep.subr.mxu0 0.0
        %2396 = vmatpush1.msra.mxu0 %v522
        %2397 = vmatprep.subr.mxu0 0.0
        %2398 = vmatpush1.msra.mxu0 %v521
        %2399 = vmatprep.subr.mxu0 0.0
        %2400 = vmatpush1.msra.mxu0 %v520
        %2401 = vmatprep.subr.mxu0 0.0
        %2402 = vmatpush1.msra.mxu0 %v519
        %2403 = vmatprep.subr.mxu0 0.0
        %2404 = vmatpush1.msra.mxu0 %v518
        %2405 = vmatprep.subr.mxu0 0.0
        %2406 = vmatpush1.msra.mxu0 %v517
        %2407 = vmatprep.subr.mxu0 0.0
        %2408 = vmatpush1.msra.mxu0 %v516
        %2409 = vmatprep.subr.mxu0 0.0
        %2410 = vmatpush2.msra.mxu0 0.0
        %2411 = vmatprep.subr.mxu0 0.0
        %2412 = vmatpush2.msra.mxu0 0.0
        %2413 = vmatprep.subr.mxu0 0.0
        %2414 = vmatpush2.msra.mxu0 0.0
        %2415 = vmatprep.subr.mxu0 0.0
        %2416 = vmatpush2.msra.mxu0 0.0
        %2417 = vmatprep.subr.mxu0 0.0
        %2418 = vmatpush2.msra.mxu0 0.0
        %2419 = vmatprep.subr.mxu0 0.0
        %2420 = vmatpush2.msra.mxu0 0.0
        %2421 = vmatprep.subr.mxu0 0.0
        %2422 = vmatpush2.msra.mxu0 0.0
        %2423 = vmatprep.subr.mxu0 0.0
        %2424 = vmatpush2.msra.mxu0 0.0
        %2425 = vmatprep.subr.mxu0 0.0
        %2426 = vmatpush2.msra.mxu0 0.0
        %2427 = vmatprep.subr.mxu0 0.0
        %2428 = vmatpush2.msra.mxu0 0.0
        %2429 = vmatprep.subr.mxu0 0.0
        %2430 = vmatpush2.msra.mxu0 0.0
        %2431 = vmatprep.subr.mxu0 0.0
        %2432 = vmatpush2.msra.mxu0 0.0
        %2433 = vmatprep.subr.mxu0 0.0
        %2434 = vmatpush2.msra.mxu0 0.0
        %2435 = vmatprep.subr.mxu0 0.0
        %2436 = vmatpush2.msra.mxu0 0.0
        %2437 = vmatprep.subr.mxu0 0.0
        %2438 = vmatpush2.msra.mxu0 0.0
        %2439 = vmatprep.subr.mxu0 0.0
        %2440 = vmatpush2.msra.mxu0 0.0
        %2441 = vmatprep.mubr.f32.mxu0 0.0
        %2442 = vmatmul.mubr.f32.gmra.mxu0 %v2373
        %v2443 = vpop.f32.mrf.mxu0
        %v2444 = vadd.f32 0.0, %v2443
        %v2445 = vpop.f32.mrf.mxu0
        %2446 = vmatprep.mubr.f32.mxu0 0.0
        %2447 = vmatmul.mubr.f32.gmra.mxu0 %v2374
        %v2448 = vpop.f32.mrf.mxu0
        %v2449 = vadd.f32 0.0, %v2448
        %v2450 = vpop.f32.mrf.mxu0
        %2451 = vmatprep.mubr.f32.mxu0 0.0
        %2452 = vmatmul.mubr.f32.gmra.mxu0 %v2375
        %v2453 = vpop.f32.mrf.mxu0
        %v2454 = vadd.f32 0.0, %v2453
        %v2455 = vpop.f32.mrf.mxu0
        %2456 = vmatprep.mubr.f32.mxu0 0.0
        %2457 = vmatmul.mubr.f32.gmra.mxu0 %v2376
        %v2458 = vpop.f32.mrf.mxu0
        %v2459 = vadd.f32 0.0, %v2458
        %v2460 = vpop.f32.mrf.mxu0
        %2461 = vdwg.mxu0
        %v2462 = vmul.f32 %v2444, 0.03125
        %v2463 = vmul.f32 %v2449, 0.03125
        %v2464 = vmul.f32 %v2454, 0.03125
        %v2465 = vmul.f32 %v2459, 0.03125
        %v2466 = vadd.f32 %v2462, 1e-05
        %v2467 = vadd.f32 %v2463, 1e-05
        %v2468 = vadd.f32 %v2464, 1e-05
        %v2469 = vadd.f32 %v2465, 1e-05
        %v2470 = vrsqrt.pop %v2466
        %v2471 = vrsqrt.pop %v2467
        %v2472 = vrsqrt.pop %v2468
        %v2473 = vrsqrt.pop %v2469
        %v2474 = vmul.f32 %v2369, %v2470
        %v2475 = vmul.f32 %v2370, %v2471
        %v2476 = vmul.f32 %v2371, %v2472
        %v2477 = vmul.f32 %v2372, %v2473
        %v2478 = vlaneseq
        %v2479 = vshrl.u32 %v2478, 7
        %v2480 = vsub.s32 1, %v2479
        %v2481 = vrot.slane %v575, %v2480
        %v2482 = vmul.f32 %v2474, %v2481
        %v2483 = vmul.f32 %v2475, %v2481
        %v2484 = vmul.f32 %v2476, %v2481
        %v2485 = vmul.f32 %v2477, %v2481
        %v2486 = vlaneseq
        %v2487 = vshrl.u32 %v2486, 7
        %v2488 = vsub.s32 2, %v2487
        %v2489 = vrot.slane %v575, %v2488
        %v2490 = vadd.f32 %v2482, %v2489
        %v2491 = vadd.f32 %v2483, %v2489
        %v2492 = vadd.f32 %v2484, %v2489
        %v2493 = vadd.f32 %v2485, %v2489
        %vm2494 = vcmp.gt.f32.partialorder %v2490, 0.0
        %vm2495 = vcmp.gt.f32.partialorder %v2491, 0.0
        %vm2496 = vcmp.gt.f32.partialorder %v2492, 0.0
        %vm2497 = vcmp.gt.f32.partialorder %v2493, 0.0
        %v2498 = vmul.f32 %v2490, 0.2
        %v2499 = vmul.f32 %v2491, 0.2
        %v2500 = vmul.f32 %v2492, 0.2
        %v2501 = vmul.f32 %v2493, 0.2
        %v2502 = vsel %vm2494, %v2490, %v2498
        %v2503 = vsel %vm2495, %v2491, %v2499
        %v2504 = vsel %vm2496, %v2492, %v2500
        %v2505 = vsel %vm2497, %v2493, %v2501
        %2506 = vst [vmem:[%s448] sm:$0xff] %v2502
        %2507 = vst [vmem:[%s448 + $0x8] sm:$0xff] %v2503
        %2508 = vst [vmem:[%s448 + $0x10] sm:$0xff] %v2504
        %2509 = vst [vmem:[%s448 + $0x18] sm:$0xff] %v2505
        %s2510 = sand.u32 %s232, 1
        %s2511 = sand.u32 %s232, 1
        %s2512 = smul.addr %s2511, 32
        %s2513 = scalar_lea.vmem [#allocation4], %s2512
        // Predicated region
        $region133: #{gat_conv_block.1} parent=123 // pred_check
          %p2514 = pneg %p242
        $region134: #{gat_conv_block.1} parent=123 // pred_check_branch
          %2516 = sbr.rel (%p2514) target = $region136
        $region135: #{gat_conv_block.1} parent=123 // pred_region
          %s2517 = smul.addr %s20, 8
          %s2518 = scalar_lea.vmem %s9, %s2517
          // Predicated region
          $region137: #{gat_conv_block.1} parent=135 // pred_check
            _
          $region138: #{gat_conv_block.1} parent=135 // pred_check_branch
            %2520 = sbr.rel (0) target = $region140
          $region139: #{gat_conv_block.1} parent=135 // pred_region
            // Predicated region
            $region141: #{gat_conv_block.1} parent=139 // pred_check
              _
            $region142: #{gat_conv_block.1} parent=139 // pred_check_branch
              %2522 = sbr.rel (0) target = $region144
            $region143: #{gat_conv_block.1} parent=139 // pred_region
              // Predicated region
              $region156: #{gat_conv_block.1} parent=143 // pred_check
                _
              $region157: #{gat_conv_block.1} parent=143 // pred_check_branch
                %2544 = sbr.rel (0) target = $region159
              $region158: #{gat_conv_block.1} parent=143 // pred_region
                loop: start=0, step=1, limit=1
                $region160: #{gat_conv_block.1} parent=158 // loop_pre_header
                  _
                $region161: #{gat_conv_block.1} parent=158 // loop_header
                  %s2546 = sphi 0, %s2550
                  %p2547 = scmp.ge.s32.totalorder %s2546, 1
                  %s2551 = sphi %s2513, %s2513
                  %s2552 = sphi %s2518, %s2518
                $region162: #{gat_conv_block.1} parent=158 // loop_header_branch
                  %2549 = sbr.rel (%p2547) target = $region166
                $region163: #{gat_conv_block.1} parent=158 // loop_body
                  %v2553 = vld [vmem:[%s2551] sm:$0xff]
                  %2554 = vst [vmem:[%s2552] sm:$0xff] %v2553
                  %v2555 = vld [vmem:[%s2551 + $0x8] sm:$0xff]
                  %2556 = vst [vmem:[%s2552 + $0x10] sm:$0xff] %v2555
                  %v2557 = vld [vmem:[%s2551 + $0x10] sm:$0xff]
                  %2558 = vst [vmem:[%s2552 + $0x20] sm:$0xff] %v2557
                  %v2559 = vld [vmem:[%s2551 + $0x18] sm:$0xff]
                  %2560 = vst [vmem:[%s2552 + $0x30] sm:$0xff] %v2559
                $region164: #{gat_conv_block.1} parent=158 // loop_footer
                  %s2550 = sadd.s32 1, %s2546
                $region165: #{gat_conv_block.1} parent=158 // loop_footer_branch
                  %2545 = sbr.rel target = $region161
                $region166: #{gat_conv_block.1} parent=158 // loop_exit
                  _
              $region159: #{gat_conv_block.1} parent=143 // pred_fallthru
                _
              // Predicated region
              $region167: #{gat_conv_block.1} parent=143 // pred_check
                _
              $region168: #{gat_conv_block.1} parent=143 // pred_check_branch
                %2562 = sbr.rel target = $region170
              $region169: #{gat_conv_block.1} parent=143 // pred_region
                _
              $region170: #{gat_conv_block.1} parent=143 // pred_fallthru
                _
            $region144: #{gat_conv_block.1} parent=139 // pred_fallthru
              _
            // Predicated region
            $region145: #{gat_conv_block.1} parent=139 // pred_check
              _
            $region146: #{gat_conv_block.1} parent=139 // pred_check_branch
              %2524 = sbr.rel target = $region148
            $region147: #{gat_conv_block.1} parent=139 // pred_region
              %s2526 = ssub.s32 256, 1
              loop: start=0, step=1, limit=1
              $region149: #{gat_conv_block.1} parent=147 // loop_pre_header
                _
              $region150: #{gat_conv_block.1} parent=147 // loop_header
                %s2528 = sphi 0, %s2532
                %p2529 = scmp.ge.s32.totalorder %s2528, 1
                %s2533 = sphi %s2513, %s2513
                %s2534 = sphi %s2518, %s2518
              $region151: #{gat_conv_block.1} parent=147 // loop_header_branch
                %2531 = sbr.rel (%p2529) target = $region155
              $region152: #{gat_conv_block.1} parent=147 // loop_body
                %v2535 = vld [vmem:[%s2533] sm:%s2526]
                %2536 = vst [vmem:[%s2534] sm:%s2526] %v2535
                %v2537 = vld [vmem:[%s2533 + $0x8] sm:%s2526]
                %2538 = vst [vmem:[%s2534 + $0x10] sm:%s2526] %v2537
                %v2539 = vld [vmem:[%s2533 + $0x10] sm:%s2526]
                %2540 = vst [vmem:[%s2534 + $0x20] sm:%s2526] %v2539
                %v2541 = vld [vmem:[%s2533 + $0x18] sm:%s2526]
                %2542 = vst [vmem:[%s2534 + $0x30] sm:%s2526] %v2541
              $region153: #{gat_conv_block.1} parent=147 // loop_footer
                %s2532 = sadd.s32 1, %s2528
              $region154: #{gat_conv_block.1} parent=147 // loop_footer_branch
                %2527 = sbr.rel target = $region150
              $region155: #{gat_conv_block.1} parent=147 // loop_exit
                _
            $region148: #{gat_conv_block.1} parent=139 // pred_fallthru
              _
          $region140: #{gat_conv_block.1} parent=135 // pred_fallthru
            _
          %2563 = vnop
        $region136: #{gat_conv_block.1} parent=123 // pred_fallthru
          _
      $region124: #{gat_conv_block.1} parent=5 // pred_fallthru
        _
      %p2564 = scmp.le.s32.totalorder 2, %s15
      // Predicated region
      $region171: #{gat_conv_block.1} parent=5 // pred_check
        %p2565 = pneg %p2564
      $region172: #{gat_conv_block.1} parent=5 // pred_check_branch
        %2567 = sbr.rel (%p2565) target = $region174
      $region173: #{gat_conv_block.1} parent=5 // pred_region
        %s2568 = ssub.s32 %s15, 2
        // Predicated region
        $region175: #{gat_conv_block.1} parent=173 // pred_check
          %p2569 = pneg %p248
        $region176: #{gat_conv_block.1} parent=173 // pred_check_branch
          %2571 = sbr.rel (%p2569) target = $region178
        $region177: #{gat_conv_block.1} parent=173 // pred_region
          %s2572 = sand.u32 %s233, 1
          %s2573 = sand.u32 %s233, 1
          %s2574 = smul.addr %s2573, 32
          %s2575 = scalar_lea.vmem [#allocation4], %s2574
        $region178: #{gat_conv_block.1} parent=173 // pred_fallthru
          _
      $region174: #{gat_conv_block.1} parent=5 // pred_fallthru
        _
    $region6: #{gat_conv_block.1} parent=1 // loop_footer
      %s19 = sadd.s32 1, %s15
    $region7: #{gat_conv_block.1} parent=1 // loop_footer_branch
      %14 = sbr.rel target = $region3
    $region8: #{gat_conv_block.1} parent=1 // loop_exit
      _

</llo_original>
